<compile_context>
chip_gen: v6e
topology: v6e:2x2x1
jax: 0.10.0
libtpu: 0.0.40
codegen_flags: <defaults>
</compile_context>

<pallas_src>
import functools

import jax
import jax.numpy as jnp
from jax.experimental import pallas as pl
from jax.experimental.pallas import tpu as pltpu

EPS = 1e-5                       # nn.BatchNorm1d default eps
_VMEM_LIMIT = 32 * 1024 * 1024   # raise v5e's 16 MiB scoped default; safe on v6e/v7x


def _round_up(a, b):
    return ((a + b - 1) // b) * b


def _stats_kernel(x_ref, c_ref, sx_ref, sc_ref, *, n_rows, tile_n):
    """Pass 1: per-feature batch statistics, merged tile-by-tile.

    sx_ref / sc_ref are (2, F) accumulators resident in VMEM across the grid:
      row 0 = running mean, row 1 = running M2 (sum of squared deviations).
    """
    i = pl.program_id(0)

    @pl.when(i == 0)
    def _init():
        sx_ref[...] = jnp.zeros_like(sx_ref)
        sc_ref[...] = jnp.zeros_like(sc_ref)

    # Valid-row mask for the (possibly ragged) last tile.
    row = i * tile_n + jax.lax.broadcasted_iota(jnp.int32, (tile_n, 1), 0)
    valid = row < n_rows
    n_new = jnp.minimum(tile_n, n_rows - i * tile_n).astype(jnp.float32)
    n_old = (i * tile_n).astype(jnp.float32)
    n_tot = n_old + n_new

    def _merge(val_ref, acc_ref):
        v = jnp.where(valid, val_ref[...].astype(jnp.float32), 0.0)     # (tile_n, F)
        t_mean = jnp.sum(v, axis=0, keepdims=True) / n_new              # (1, F)
        centered = jnp.where(valid, v - t_mean, 0.0)
        t_m2 = jnp.sum(centered * centered, axis=0, keepdims=True)      # (1, F)
        a_mean = acc_ref[0:1, :]
        a_m2 = acc_ref[1:2, :]
        delta = t_mean - a_mean
        acc_ref[0:1, :] = a_mean + delta * (n_new / n_tot)
        acc_ref[1:2, :] = a_m2 + t_m2 + (delta * delta) * (n_old * n_new / n_tot)

    _merge(x_ref, sx_ref)
    _merge(c_ref, sc_ref)


def _apply_kernel(x_ref, c_ref, wx_ref, wc_ref, b_ref, o_ref, *, precision):
    """Pass 2: out_tile = x_tile @ Wx + c_tile @ Wc + bias (norm folded into W/b)."""
    acc = jnp.dot(x_ref[...], wx_ref[...],
                  preferred_element_type=jnp.float32, precision=precision)
    acc = acc + jnp.dot(c_ref[...], wc_ref[...],
                        preferred_element_type=jnp.float32, precision=precision)
    o_ref[...] = (acc + b_ref[...]).astype(o_ref.dtype)


@functools.partial(jax.jit, static_argnames=("project", "block_rows"))
def concat_norm1d(x, c, gamma, beta, w=None, b=None, *, project=True,
                  block_rows=1024):
    """Pallas ConcatNorm1d forward.

    x:     (..., x_dim)
    c:     broadcastable to (*x.shape[:-1], c_dim)
    gamma: (D,)   beta: (D,)                 D = x_dim + c_dim
    w:     (x_dim, D) PyTorch Linear weight (project=True)   b: (x_dim,)
    """
    x_dim = x.shape[-1]
    c_dim = c.shape[-1]
    d = x_dim + c_dim
    lead = x.shape[:-1]

    # Flatten.  Only the (N, c_dim) broadcast of c is materialized (c_dim << D);
    # the full (N, D) concat never hits HBM.
    x_flat = x.reshape(-1, x_dim)
    c_flat = jnp.broadcast_to(c, lead + (c_dim,)).reshape(-1, c_dim)
    n = x_flat.shape[0]
    itemsize = jnp.dtype(x.dtype).itemsize

    tile_n = min(block_rows, _round_up(n, 8))
    nt = pl.cdiv(n, tile_n)

    # ---------------- Pass 1: batch statistics (sequential accumulator) ----------------
    stats_x, stats_c = pl.pallas_call(
        functools.partial(_stats_kernel, n_rows=n, tile_n=tile_n),
        out_shape=(jax.ShapeDtypeStruct((2, x_dim), jnp.float32),
                   jax.ShapeDtypeStruct((2, c_dim), jnp.float32)),
        grid_spec=pltpu.PrefetchScalarGridSpec(
            num_scalar_prefetch=0,
            grid=(nt,),
            in_specs=[
                pl.BlockSpec((tile_n, x_dim), lambda i: (i, 0)),
                pl.BlockSpec((tile_n, c_dim), lambda i: (i, 0)),
            ],
            out_specs=(
                pl.BlockSpec((2, x_dim), lambda i: (0, 0)),
                pl.BlockSpec((2, c_dim), lambda i: (0, 0)),
            ),
        ),
        compiler_params=pltpu.CompilerParams(
            dimension_semantics=("arbitrary",),
            vmem_limit_bytes=_VMEM_LIMIT),
        cost_estimate=pl.CostEstimate(
            flops=6 * n * d, transcendentals=0,
            bytes_accessed=n * d * itemsize + 8 * d),
    )(x_flat, c_flat)

    # ---------------- Tiny JAX glue: fold normalization into the apply matmul ----------
    mean = jnp.concatenate([stats_x[0], stats_c[0]])            # (D,)
    var = jnp.concatenate([stats_x[1], stats_c[1]]) / n         # biased variance
    inv = jax.lax.rsqrt(var + EPS)
    scale = gamma.astype(jnp.float32) * inv                     # (D,)
    shift = beta.astype(jnp.float32) - mean * scale             # (D,)

    if project:
        wt = w.astype(jnp.float32).T                            # (D, x_dim)
        w_fold = scale[:, None] * wt                            # diag(scale) @ W.T
        b_fold = jnp.sum(shift[:, None] * wt, axis=0) + b.astype(jnp.float32)
        out_w = x_dim
    else:
        # Block-diagonal scale-placement matrix: Identity path reuses the same
        # lane-aligned matmul kernel (negligible MXU cost at batch-norm-sized D).
        w_fold = jnp.eye(d, dtype=jnp.float32) * scale[None, :]  # (D, D)
        b_fold = shift
        out_w = d
    wx, wc = w_fold[:x_dim], w_fold[x_dim:]

    # bf16 inputs -> bf16 weights on the MXU (f32 accumulation preserved);
    # f32 inputs -> full-precision f32 matmul path.
    if x.dtype == jnp.bfloat16:
        mm_dtype, precision = jnp.bfloat16, None
    else:
        mm_dtype, precision = jnp.float32, jax.lax.Precision.HIGHEST
    wx = wx.astype(mm_dtype)
    wc = wc.astype(mm_dtype)
    b_row = b_fold.reshape(1, out_w).astype(jnp.float32)

    # ---------------- Pass 2: normalize (+ project), parallel over row tiles ----------
    out_flat = pl.pallas_call(
        functools.partial(_apply_kernel, precision=precision),
        out_shape=jax.ShapeDtypeStruct((n, out_w), x.dtype),
        grid_spec=pltpu.PrefetchScalarGridSpec(
            num_scalar_prefetch=0,
            grid=(nt,),
            in_specs=[
                pl.BlockSpec((tile_n, x_dim), lambda i: (i, 0)),
                pl.BlockSpec((tile_n, c_dim), lambda i: (i, 0)),
                pl.BlockSpec((x_dim, out_w), lambda i: (0, 0)),
                pl.BlockSpec((c_dim, out_w), lambda i: (0, 0)),
                pl.BlockSpec((1, out_w), lambda i: (0, 0)),
            ],
            out_specs=pl.BlockSpec((tile_n, out_w), lambda i: (i, 0)),
        ),
        compiler_params=pltpu.CompilerParams(
            dimension_semantics=("parallel",),
            vmem_limit_bytes=_VMEM_LIMIT),
        cost_estimate=pl.CostEstimate(
            flops=2 * n * d * out_w, transcendentals=0,
            bytes_accessed=(n * d + n * out_w) * itemsize + d * out_w * 4),
    )(x_flat, c_flat, wx, wc, b_row)

    return out_flat.reshape(lead + (out_w,))


def _reference(x, c, gamma, beta, w, b, project):
    """Pure-JAX reference matching PyTorch training-mode BatchNorm1d (+ Linear)."""
    x_dim = x.shape[-1]
    c_dim = c.shape[-1]
    lead = x.shape[:-1]
    c_full = jnp.broadcast_to(c, lead + (c_dim,))
    h = jnp.concatenate([x, c_full], axis=-1).reshape(-1, x_dim + c_dim)
    mean = jnp.mean(h, axis=0, keepdims=True)
    var = jnp.mean((h - mean) ** 2, axis=0, keepdims=True)      # biased
    h = (h - mean) / jnp.sqrt(var + EPS) * gamma + beta
    if project:
        h = jnp.dot(h, w.T, precision=jax.lax.Precision.HIGHEST) + b
        return h.reshape(lead + (x_dim,))
    return h.reshape(lead + (x_dim + c_dim,))


if __name__ == "__main__":
    x_dim, c_dim = 24, 8
    d = x_dim + c_dim

    key = jax.random.PRNGKey(0)
    kx, kc, kg, kb, kw, kbias, kx2, kc2 = jax.random.split(key, 8)

    gamma = 1.0 + 0.1 * jax.random.normal(kg, (d,), dtype=jnp.float32)
    beta = 0.1 * jax.random.normal(kb, (d,), dtype=jnp.float32)
    w = jax.random.normal(kw, (x_dim, d), dtype=jnp.float32) / jnp.sqrt(d)
    b = 0.05 * jax.random.normal(kbias, (x_dim,), dtype=jnp.float32)

    # TODO(synk): running_mean/running_var buffer updates (training-time side
    # effect of BatchNorm1d) are not modeled; only the forward output is.

    # ---- project=True: N = 16 rows, single resident tile ----
    batch, seq = 2, 8
    x = jax.random.normal(kx, (batch, seq, x_dim), dtype=jnp.float32)
    c = jax.random.normal(kc, (batch, 1, c_dim), dtype=jnp.float32)  # broadcast over seq
    y_proj = concat_norm1d(x, c, gamma, beta, w, b, project=True)
    jax.block_until_ready(y_proj)
    ref_proj = _reference(x, c, gamma, beta, w, b, True)
    assert y_proj.shape == (batch, seq, x_dim)
    assert jnp.allclose(y_proj, ref_proj, atol=1e-4, rtol=1e-4), \
        float(jnp.max(jnp.abs(y_proj - ref_proj)))

    # ---- project=False: ragged N = 18 rows with 8-row tiles (exercises the
    #      multi-tile masked stats merge and the partial last output block) ----
    batch, seq = 2, 9
    x2 = jax.random.normal(kx2, (batch, seq, x_dim), dtype=jnp.float32)
    c2 = jax.random.normal(kc2, (batch, 1, c_dim), dtype=jnp.float32)
    y_id = concat_norm1d(x2, c2, gamma, beta, project=False, block_rows=8)
    jax.block_until_ready(y_id)
    ref_id = _reference(x2, c2, gamma, beta, None, None, False)
    assert y_id.shape == (batch, seq, d)
    assert jnp.allclose(y_id, ref_id, atol=1e-4, rtol=1e-4), \
        float(jnp.max(jnp.abs(y_id - ref_id)))

    print("KERNEL_OK")
</pallas_src>

<mosaic_0001>
module attributes {stable_mosaic.version = 11 : i64} {
  func.func @_stats_kernel(%arg0: i32, %arg1: memref<16x24xf32, #tpu.memory_space<vmem>>, %arg2: memref<16x8xf32, #tpu.memory_space<vmem>>, %arg3: memref<2x24xf32, #tpu.memory_space<vmem>>, %arg4: memref<2x8xf32, #tpu.memory_space<vmem>>) attributes {dimension_semantics = [#tpu.dimension_semantics<arbitrary>], iteration_bounds = array<i64: 1>, scalar_prefetch = 0 : i64, scratch_operands = 0 : i64, tpu.core_type = #tpu.core_type<tc>, window_params = [{transform_indices = @transform_0, window_bounds = array<i64: 16, 24>}, {transform_indices = @transform_1, window_bounds = array<i64: 16, 8>}, {pipeline_mode = #tpu.pipeline_mode<synchronous>, transform_indices = @transform_2, window_bounds = array<i64: 2, 24>}, {pipeline_mode = #tpu.pipeline_mode<synchronous>, transform_indices = @transform_3, window_bounds = array<i64: 2, 8>}]} {
    %c0_i32 = arith.constant 0 : i32
    %0 = arith.cmpi eq, %arg0, %c0_i32 : i32
    %1 = arith.extui %0 : i1 to i32
    %c0_i32_0 = arith.constant 0 : i32
    %2 = arith.cmpi ne, %1, %c0_i32_0 : i32
    scf.if %2 {
      %cst_31 = arith.constant 0.000000e+00 : f32
      %84 = vector.broadcast %cst_31 : f32 to vector<2x24xf32>
      %c0_32 = arith.constant 0 : index
      %c0_33 = arith.constant 0 : index
      %85 = vector.load %arg3[%c0_32, %c0_33] : memref<2x24xf32, #tpu.memory_space<vmem>>, vector<2x24xf32>
      tpu.vector_store %arg3[%c0_32, %c0_33], %84 {strides = array<i32>} : memref<2x24xf32, #tpu.memory_space<vmem>>, vector<2x24xf32>,
      %cst_34 = arith.constant 0.000000e+00 : f32
      %86 = vector.broadcast %cst_34 : f32 to vector<2x8xf32>
      %c0_35 = arith.constant 0 : index
      %c0_36 = arith.constant 0 : index
      %87 = vector.load %arg4[%c0_35, %c0_36] : memref<2x8xf32, #tpu.memory_space<vmem>>, vector<2x8xf32>
      tpu.vector_store %arg4[%c0_35, %c0_36], %86 {strides = array<i32>} : memref<2x8xf32, #tpu.memory_space<vmem>>, vector<2x8xf32>,
    } else {
    }
    %c16_i32 = arith.constant 16 : i32
    %3 = arith.muli %arg0, %c16_i32 : i32
    %4 = tpu.iota {dimensions = array<i32: 0>} : vector<16x1xi32>
    %5 = vector.broadcast %3 : i32 to vector<16x1xi32>
    %6 = arith.addi %5, %4 : vector<16x1xi32>
    %c16_i32_1 = arith.constant 16 : i32
    %7 = vector.broadcast %c16_i32_1 : i32 to vector<16x1xi32>
    %8 = arith.cmpi slt, %6, %7 : vector<16x1xi32>
    %c16_i32_2 = arith.constant 16 : i32
    %9 = arith.muli %arg0, %c16_i32_2 : i32
    %c16_i32_3 = arith.constant 16 : i32
    %10 = arith.subi %c16_i32_3, %9 : i32
    %c16_i32_4 = arith.constant 16 : i32
    %11 = arith.minsi %c16_i32_4, %10 : i32
    %12 = arith.sitofp %11 : i32 to f32
    %c16_i32_5 = arith.constant 16 : i32
    %13 = arith.muli %arg0, %c16_i32_5 : i32
    %14 = arith.sitofp %13 : i32 to f32
    %15 = arith.addf %14, %12 : f32
    %c0 = arith.constant 0 : index
    %c0_6 = arith.constant 0 : index
    %16 = vector.load %arg1[%c0, %c0_6] : memref<16x24xf32, #tpu.memory_space<vmem>>, vector<16x24xf32>
    %cst = arith.constant 0.000000e+00 : f32
    %17 = vector.shape_cast %8 : vector<16x1xi1> to vector<16x1xi1>
    %18 = vector.broadcast %17 : vector<16x1xi1> to vector<16x24xi1>
    %19 = vector.broadcast %cst : f32 to vector<16x24xf32>
    %20 = arith.select %18, %16, %19 : vector<16x24xi1>, vector<16x24xf32>
    %cst_7 = arith.constant dense<0.000000e+00> : vector<24xf32>
    %21 = vector.multi_reduction <add>, %20, %cst_7 [0] : vector<16x24xf32> to vector<24xf32>
    %22 = vector.shape_cast %21 : vector<24xf32> to vector<1x24xf32>
    %23 = vector.broadcast %12 : f32 to vector<1x24xf32>
    %24 = arith.divf %22, %23 : vector<1x24xf32>
    %25 = vector.broadcast %24 : vector<1x24xf32> to vector<16x24xf32>
    %26 = arith.subf %20, %25 : vector<16x24xf32>
    %cst_8 = arith.constant 0.000000e+00 : f32
    %27 = vector.shape_cast %8 : vector<16x1xi1> to vector<16x1xi1>
    %28 = vector.broadcast %27 : vector<16x1xi1> to vector<16x24xi1>
    %29 = vector.broadcast %cst_8 : f32 to vector<16x24xf32>
    %30 = arith.select %28, %26, %29 : vector<16x24xi1>, vector<16x24xf32>
    %31 = arith.mulf %30, %30 : vector<16x24xf32>
    %cst_9 = arith.constant dense<0.000000e+00> : vector<24xf32>
    %32 = vector.multi_reduction <add>, %31, %cst_9 [0] : vector<16x24xf32> to vector<24xf32>
    %33 = vector.shape_cast %32 : vector<24xf32> to vector<1x24xf32>
    %c0_10 = arith.constant 0 : index
    %c0_11 = arith.constant 0 : index
    %34 = vector.load %arg3[%c0_10, %c0_11] : memref<2x24xf32, #tpu.memory_space<vmem>>, vector<1x24xf32>
    %c1 = arith.constant 1 : index
    %c0_12 = arith.constant 0 : index
    %35 = vector.load %arg3[%c1, %c0_12] : memref<2x24xf32, #tpu.memory_space<vmem>>, vector<1x24xf32>
    %36 = arith.subf %24, %34 : vector<1x24xf32>
    %37 = arith.divf %12, %15 : f32
    %38 = vector.broadcast %37 : f32 to vector<1x24xf32>
    %39 = arith.mulf %36, %38 : vector<1x24xf32>
    %40 = arith.addf %34, %39 : vector<1x24xf32>
    %c0_13 = arith.constant 0 : index
    %c0_14 = arith.constant 0 : index
    %41 = vector.load %arg3[%c0_13, %c0_14] : memref<2x24xf32, #tpu.memory_space<vmem>>, vector<1x24xf32>
    tpu.vector_store %arg3[%c0_13, %c0_14], %40 {strides = array<i32>} : memref<2x24xf32, #tpu.memory_space<vmem>>, vector<1x24xf32>,
    %42 = arith.addf %35, %33 : vector<1x24xf32>
    %43 = arith.mulf %36, %36 : vector<1x24xf32>
    %44 = arith.mulf %14, %12 : f32
    %45 = arith.divf %44, %15 : f32
    %46 = vector.broadcast %45 : f32 to vector<1x24xf32>
    %47 = arith.mulf %43, %46 : vector<1x24xf32>
    %48 = arith.addf %42, %47 : vector<1x24xf32>
    %c1_15 = arith.constant 1 : index
    %c0_16 = arith.constant 0 : index
    %49 = vector.load %arg3[%c1_15, %c0_16] : memref<2x24xf32, #tpu.memory_space<vmem>>, vector<1x24xf32>
    tpu.vector_store %arg3[%c1_15, %c0_16], %48 {strides = array<i32>} : memref<2x24xf32, #tpu.memory_space<vmem>>, vector<1x24xf32>,
    %c0_17 = arith.constant 0 : index
    %c0_18 = arith.constant 0 : index
    %50 = vector.load %arg2[%c0_17, %c0_18] : memref<16x8xf32, #tpu.memory_space<vmem>>, vector<16x8xf32>
    %cst_19 = arith.constant 0.000000e+00 : f32
    %51 = vector.shape_cast %8 : vector<16x1xi1> to vector<16x1xi1>
    %52 = vector.broadcast %51 : vector<16x1xi1> to vector<16x8xi1>
    %53 = vector.broadcast %cst_19 : f32 to vector<16x8xf32>
    %54 = arith.select %52, %50, %53 : vector<16x8xi1>, vector<16x8xf32>
    %cst_20 = arith.constant dense<0.000000e+00> : vector<8xf32>
    %55 = vector.multi_reduction <add>, %54, %cst_20 [0] : vector<16x8xf32> to vector<8xf32>
    %56 = vector.shape_cast %55 : vector<8xf32> to vector<1x8xf32>
    %57 = vector.broadcast %12 : f32 to vector<1x8xf32>
    %58 = arith.divf %56, %57 : vector<1x8xf32>
    %59 = vector.broadcast %58 : vector<1x8xf32> to vector<16x8xf32>
    %60 = arith.subf %54, %59 : vector<16x8xf32>
    %cst_21 = arith.constant 0.000000e+00 : f32
    %61 = vector.shape_cast %8 : vector<16x1xi1> to vector<16x1xi1>
    %62 = vector.broadcast %61 : vector<16x1xi1> to vector<16x8xi1>
    %63 = vector.broadcast %cst_21 : f32 to vector<16x8xf32>
    %64 = arith.select %62, %60, %63 : vector<16x8xi1>, vector<16x8xf32>
    %65 = arith.mulf %64, %64 : vector<16x8xf32>
    %cst_22 = arith.constant dense<0.000000e+00> : vector<8xf32>
    %66 = vector.multi_reduction <add>, %65, %cst_22 [0] : vector<16x8xf32> to vector<8xf32>
    %67 = vector.shape_cast %66 : vector<8xf32> to vector<1x8xf32>
    %c0_23 = arith.constant 0 : index
    %c0_24 = arith.constant 0 : index
    %68 = vector.load %arg4[%c0_23, %c0_24] : memref<2x8xf32, #tpu.memory_space<vmem>>, vector<1x8xf32>
    %c1_25 = arith.constant 1 : index
    %c0_26 = arith.constant 0 : index
    %69 = vector.load %arg4[%c1_25, %c0_26] : memref<2x8xf32, #tpu.memory_space<vmem>>, vector<1x8xf32>
    %70 = arith.subf %58, %68 : vector<1x8xf32>
    %71 = arith.divf %12, %15 : f32
    %72 = vector.broadcast %71 : f32 to vector<1x8xf32>
    %73 = arith.mulf %70, %72 : vector<1x8xf32>
    %74 = arith.addf %68, %73 : vector<1x8xf32>
    %c0_27 = arith.constant 0 : index
    %c0_28 = arith.constant 0 : index
    %75 = vector.load %arg4[%c0_27, %c0_28] : memref<2x8xf32, #tpu.memory_space<vmem>>, vector<1x8xf32>
    tpu.vector_store %arg4[%c0_27, %c0_28], %74 {strides = array<i32>} : memref<2x8xf32, #tpu.memory_space<vmem>>, vector<1x8xf32>,
    %76 = arith.addf %69, %67 : vector<1x8xf32>
    %77 = arith.mulf %70, %70 : vector<1x8xf32>
    %78 = arith.mulf %14, %12 : f32
    %79 = arith.divf %78, %15 : f32
    %80 = vector.broadcast %79 : f32 to vector<1x8xf32>
    %81 = arith.mulf %77, %80 : vector<1x8xf32>
    %82 = arith.addf %76, %81 : vector<1x8xf32>
    %c1_29 = arith.constant 1 : index
    %c0_30 = arith.constant 0 : index
    %83 = vector.load %arg4[%c1_29, %c0_30] : memref<2x8xf32, #tpu.memory_space<vmem>>, vector<1x8xf32>
    tpu.vector_store %arg4[%c1_29, %c0_30], %82 {strides = array<i32>} : memref<2x8xf32, #tpu.memory_space<vmem>>, vector<1x8xf32>,
    return
  }
  func.func @transform_0(%arg0: i32) -> (i32, i32) {
    %c0_i32 = arith.constant 0 : i32
    %c0_i32_0 = arith.constant 0 : i32
    return %arg0, %c0_i32 : i32, i32
  }
  func.func @transform_1(%arg0: i32) -> (i32, i32) {
    %c0_i32 = arith.constant 0 : i32
    %c0_i32_0 = arith.constant 0 : i32
    return %arg0, %c0_i32 : i32, i32
  }
  func.func @transform_2(%arg0: i32) -> (i32, i32) {
    %c0_i32 = arith.constant 0 : i32
    %c0_i32_0 = arith.constant 0 : i32
    %c0_i32_1 = arith.constant 0 : i32
    return %c0_i32, %c0_i32_0 : i32, i32
  }
  func.func @transform_3(%arg0: i32) -> (i32, i32) {
    %c0_i32 = arith.constant 0 : i32
    %c0_i32_0 = arith.constant 0 : i32
    %c0_i32_1 = arith.constant 0 : i32
    return %c0_i32, %c0_i32_0 : i32, i32
  }
}

module attributes {stable_mosaic.version = 11 : i64} {
  func.func @_apply_kernel(%arg0: i32, %arg1: memref<16x24xf32, #tpu.memory_space<vmem>>, %arg2: memref<16x8xf32, #tpu.memory_space<vmem>>, %arg3: memref<24x24xf32, #tpu.memory_space<vmem>>, %arg4: memref<8x24xf32, #tpu.memory_space<vmem>>, %arg5: memref<1x24xf32, #tpu.memory_space<vmem>>, %arg6: memref<16x24xf32, #tpu.memory_space<vmem>>) attributes {dimension_semantics = [#tpu.dimension_semantics<parallel>], iteration_bounds = array<i64: 1>, scalar_prefetch = 0 : i64, scratch_operands = 0 : i64, tpu.core_type = #tpu.core_type<tc>, window_params = [{transform_indices = @transform_0, window_bounds = array<i64: 16, 24>}, {transform_indices = @transform_1, window_bounds = array<i64: 16, 8>}, {pipeline_mode = #tpu.pipeline_mode<synchronous>, transform_indices = @transform_2, window_bounds = array<i64: 24, 24>}, {pipeline_mode = #tpu.pipeline_mode<synchronous>, transform_indices = @transform_3, window_bounds = array<i64: 8, 24>}, {pipeline_mode = #tpu.pipeline_mode<synchronous>, transform_indices = @transform_4, window_bounds = array<i64: 1, 24>}, {transform_indices = @transform_5, window_bounds = array<i64: 16, 24>}]} {
    %c0 = arith.constant 0 : index
    %c0_0 = arith.constant 0 : index
    %0 = vector.load %arg1[%c0, %c0_0] : memref<16x24xf32, #tpu.memory_space<vmem>>, vector<16x24xf32>
    %c0_1 = arith.constant 0 : index
    %c0_2 = arith.constant 0 : index
    %1 = vector.load %arg3[%c0_1, %c0_2] : memref<24x24xf32, #tpu.memory_space<vmem>>, vector<24x24xf32>
    %cst = arith.constant dense<0.000000e+00> : vector<16x24xf32>
    %2 = tpu.matmul %0, %1, %cst {dimension_numbers = #tpu.dot_dimension_numbers<[1], [0], [0], [1], [0, 0, 1, 1], [], []>, precision = #tpu.contract_precision<fp32>} : vector<16x24xf32>, vector<24x24xf32>, vector<16x24xf32> -> vector<16x24xf32>
    %c0_3 = arith.constant 0 : index
    %c0_4 = arith.constant 0 : index
    %3 = vector.load %arg2[%c0_3, %c0_4] : memref<16x8xf32, #tpu.memory_space<vmem>>, vector<16x8xf32>
    %c0_5 = arith.constant 0 : index
    %c0_6 = arith.constant 0 : index
    %4 = vector.load %arg4[%c0_5, %c0_6] : memref<8x24xf32, #tpu.memory_space<vmem>>, vector<8x24xf32>
    %cst_7 = arith.constant dense<0.000000e+00> : vector<16x24xf32>
    %5 = tpu.matmul %3, %4, %cst_7 {dimension_numbers = #tpu.dot_dimension_numbers<[1], [0], [0], [1], [0, 0, 1, 1], [], []>, precision = #tpu.contract_precision<fp32>} : vector<16x8xf32>, vector<8x24xf32>, vector<16x24xf32> -> vector<16x24xf32>
    %6 = arith.addf %2, %5 : vector<16x24xf32>
    %c0_8 = arith.constant 0 : index
    %c0_9 = arith.constant 0 : index
    %7 = vector.load %arg5[%c0_8, %c0_9] : memref<1x24xf32, #tpu.memory_space<vmem>>, vector<1x24xf32>
    %8 = vector.broadcast %7 : vector<1x24xf32> to vector<16x24xf32>
    %9 = arith.addf %6, %8 : vector<16x24xf32>
    %c0_10 = arith.constant 0 : index
    %c0_11 = arith.constant 0 : index
    %10 = vector.load %arg6[%c0_10, %c0_11] : memref<16x24xf32, #tpu.memory_space<vmem>>, vector<16x24xf32>
    tpu.vector_store %arg6[%c0_10, %c0_11], %9 {strides = array<i32>} : memref<16x24xf32, #tpu.memory_space<vmem>>, vector<16x24xf32>,
    return
  }
  func.func @transform_0(%arg0: i32) -> (i32, i32) {
    %c0_i32 = arith.constant 0 : i32
    %c0_i32_0 = arith.constant 0 : i32
    return %arg0, %c0_i32 : i32, i32
  }
  func.func @transform_1(%arg0: i32) -> (i32, i32) {
    %c0_i32 = arith.constant 0 : i32
    %c0_i32_0 = arith.constant 0 : i32
    return %arg0, %c0_i32 : i32, i32
  }
  func.func @transform_2(%arg0: i32) -> (i32, i32) {
    %c0_i32 = arith.constant 0 : i32
    %c0_i32_0 = arith.constant 0 : i32
    %c0_i32_1 = arith.constant 0 : i32
    return %c0_i32, %c0_i32_0 : i32, i32
  }
  func.func @transform_3(%arg0: i32) -> (i32, i32) {
    %c0_i32 = arith.constant 0 : i32
    %c0_i32_0 = arith.constant 0 : i32
    %c0_i32_1 = arith.constant 0 : i32
    return %c0_i32, %c0_i32_0 : i32, i32
  }
  func.func @transform_4(%arg0: i32) -> (i32, i32) {
    %c0_i32 = arith.constant 0 : i32
    %c0_i32_0 = arith.constant 0 : i32
    %c0_i32_1 = arith.constant 0 : i32
    return %c0_i32, %c0_i32_0 : i32, i32
  }
  func.func @transform_5(%arg0: i32) -> (i32, i32) {
    %c0_i32 = arith.constant 0 : i32
    %c0_i32_0 = arith.constant 0 : i32
    return %arg0, %c0_i32 : i32, i32
  }
}

</mosaic_0001>

<llo_original>
// kernel: concat_norm1d.2
$region0: #{concat_norm1d.2}
  #allocation0 [shape = 'u32[]', space=smem, size = 0x4, offset = 0x4, fixed_abs, tag = 'smem constant byte address 0x4 - core index']
  #allocation1 [shape = 'u32[144,128]{1,0:T(1,128)}', space=vmem, size = 0x12000, scoped, tag = 'internal scratch']
  %s0 = inlined_call_operand.vmem [shape: f32[16,24], index: 0, kind: input, shape index: {}]
  %s1 = inlined_call_operand.vmem [shape: f32[16,8], index: 1, kind: input, shape index: {}]
  %s2 = inlined_call_operand.vmem [shape: f32[2,24], index: 2, kind: output, shape index: {0}]
  %s3 = inlined_call_operand.vmem [shape: f32[2,8], index: 3, kind: output, shape index: {1}]
  %4 = xla_tuple %s2, %s3
  %s5 = sld [smem:[#allocation0]]
  $region30: #{concat_norm1d.2} parent=0
    _
  %s7 = ssub.s32 1, %s5
  %s8 = scalar_select 0, %s7, %s5
  // Predicated region
  $region2: #{concat_norm1d.2} parent=0 // pred_check
    _
  $region3: #{concat_norm1d.2} parent=0 // pred_check_branch
    %10 = sbr.rel (0) target = $region5
  $region4: #{concat_norm1d.2} parent=0 // pred_region
    _
  $region5: #{concat_norm1d.2} parent=0 // pred_fallthru
    _
  // Predicated region
  $region6: #{concat_norm1d.2} parent=0 // pred_check
    _
  $region7: #{concat_norm1d.2} parent=0 // pred_check_branch
    %12 = sbr.rel (0) target = $region9
  $region8: #{concat_norm1d.2} parent=0 // pred_region
    _
  $region9: #{concat_norm1d.2} parent=0 // pred_fallthru
    _
  %p13 = scmp.eq.s32.totalorder 0, 0
  // Predicated region
  $region10: #{concat_norm1d.2} parent=0 // pred_check
    %p14 = pneg %p13
  $region11: #{concat_norm1d.2} parent=0 // pred_check_branch
    %16 = sbr.rel (%p14) target = $region13
  $region12: #{concat_norm1d.2} parent=0 // pred_region
    %vm17 = vcmask 189440
    %18 = vst.msk [vmem:[%s2] sm:$0x3] %vm17, 0.0
    %vm19 = vcmask 58368
    %20 = vst.msk [vmem:[%s3] sm:$0x3] %vm19, 0.0
  $region13: #{concat_norm1d.2} parent=0 // pred_fallthru
    _
  %s21 = smul.u32 0, 16
  %v22 = vlaneseq
  %v23 = vshrl.u32 %v22, 7
  %v24 = vadd.s32 %v23, 8
  %v25 = vstv %s21
  %v26 = vadd.s32 %v25, %v23
  %v27 = vadd.s32 %v25, %v24
  %vm28 = vcmp.lt.s32.totalorder %v26, 16
  %vm29 = vcmp.lt.s32.totalorder %v27, 16
  %s30 = ssub.s32 16, %s21
  %p31 = scmp.lt.s32.totalorder %s30, 16
  %s32 = scalar_select %p31, %s30, 16
  %s33 = scvt.s32.f32 %s32
  %s34 = scvt.s32.f32 %s21
  %s35 = sadd.f32 %s34, %s33
  %v36 = vld [vmem:[%s0] sm:$0xff]
  %v37 = vld [vmem:[%s0 + $0x8] sm:$0xff]
  %v38 = vsel %vm28, 1, 0
  %v39 = vsel %vm29, 1, 0
  %vm40 = vcmp.eq.s32.totalorder %v38, 1
  %vm41 = vcmp.eq.s32.totalorder %v39, 1
  %v42 = vsel %vm40, %v36, 0.0
  %v43 = vsel %vm41, %v37, 0.0
  %vm44 = vcmask 195584
  %v45 = vsel %vm44, %v42, 0.0
  %v46 = vsel %vm44, %v43, 0.0
  %v47 = vadd.f32 %v45, %v46
  %v48 = vrot.slane %v47, 4
  %v49 = vadd.f32 %v47, %v48
  %v50 = vrot.slane %v49, 2
  %v51 = vadd.f32 %v49, %v50
  %v52 = vrot.slane %v51, 1
  %v53 = vadd.f32 %v51, %v52
  %v54 = vstv %s33
  %v55 = vrcp.pop %v54
  %v56 = vmul.f32 %v53, %v55
  %v57 = vsub.f32 %v42, %v56
  %v58 = vsub.f32 %v43, %v56
  %v59 = vsel %vm40, %v57, 0.0
  %v60 = vsel %vm41, %v58, 0.0
  %v61 = vmul.f32 %v59, %v59
  %v62 = vmul.f32 %v60, %v60
  %v63 = vsel %vm44, %v61, 0.0
  %v64 = vsel %vm44, %v62, 0.0
  %v65 = vadd.f32 %v63, %v64
  %v66 = vrot.slane %v65, 4
  %v67 = vadd.f32 %v65, %v66
  %v68 = vrot.slane %v67, 2
  %v69 = vadd.f32 %v67, %v68
  %v70 = vrot.slane %v69, 1
  %v71 = vadd.f32 %v69, %v70
  %v72 = vld [vmem:[%s2] sm:$0x1]
  %v73 = vld [vmem:[%s2 + $0x1] sm:$0x1]
  %v74 = vsub.f32 %v56, %v72
  %v75 = vstv %s35
  %v76 = vrcp.pop %v75
  %s77 = vtos %v76
  %s78 = smul.f32 %s33, %s77
  %v79 = vstv %s78
  %v80 = vmul.f32 %v74, %v79
  %v81 = vadd.f32 %v72, %v80
  %vm82 = vcmask 188416
  %83 = vst.msk [vmem:[%s2] sm:$0x1] %vm82, %v81
  %v84 = vadd.f32 %v73, %v71
  %v85 = vmul.f32 %v74, %v74
  %s86 = smul.f32 %s34, %s33
  %v87 = vstv %s35
  %v88 = vrcp.pop %v87
  %s89 = vtos %v88
  %s90 = smul.f32 %s86, %s89
  %v91 = vstv %s90
  %v92 = vmul.f32 %v85, %v91
  %v93 = vadd.f32 %v84, %v92
  %94 = vst.msk [vmem:[%s2 + $0x1] sm:$0x1] %vm82, %v93
  %v95 = vld [vmem:[%s1] sm:$0xff]
  %v96 = vld [vmem:[%s1 + $0x8] sm:$0xff]
  %v97 = vsel %vm40, %v95, 0.0
  %v98 = vsel %vm41, %v96, 0.0
  %vm99 = vcmask 64512
  %v100 = vsel %vm99, %v97, 0.0
  %v101 = vsel %vm99, %v98, 0.0
  %v102 = vadd.f32 %v100, %v101
  %v103 = vrot.slane %v102, 4
  %v104 = vadd.f32 %v102, %v103
  %v105 = vrot.slane %v104, 2
  %v106 = vadd.f32 %v104, %v105
  %v107 = vrot.slane %v106, 1
  %v108 = vadd.f32 %v106, %v107
  %v109 = vmul.f32 %v108, %v55
  %v110 = vsub.f32 %v97, %v109
  %v111 = vsub.f32 %v98, %v109
  %v112 = vsel %vm40, %v110, 0.0
  %v113 = vsel %vm41, %v111, 0.0
  %v114 = vmul.f32 %v112, %v112
  %v115 = vmul.f32 %v113, %v113
  %v116 = vsel %vm99, %v114, 0.0
  %v117 = vsel %vm99, %v115, 0.0
  %v118 = vadd.f32 %v116, %v117
  %v119 = vrot.slane %v118, 4
  %v120 = vadd.f32 %v118, %v119
  %v121 = vrot.slane %v120, 2
  %v122 = vadd.f32 %v120, %v121
  %v123 = vrot.slane %v122, 1
  %v124 = vadd.f32 %v122, %v123
  %v125 = vld [vmem:[%s3] sm:$0x1]
  %v126 = vld [vmem:[%s3 + $0x1] sm:$0x1]
  %v127 = vsub.f32 %v109, %v125
  %v128 = vmul.f32 %v127, %v79
  %v129 = vadd.f32 %v125, %v128
  %vm130 = vcmask 57344
  %131 = vst.msk [vmem:[%s3] sm:$0x1] %vm130, %v129
  %v132 = vadd.f32 %v126, %v124
  %v133 = vmul.f32 %v127, %v127
  %v134 = vmul.f32 %v133, %v91
  %v135 = vadd.f32 %v132, %v134
  %136 = vst.msk [vmem:[%s3 + $0x1] sm:$0x1] %vm130, %v135
  // Predicated region
  $region14: #{concat_norm1d.2} parent=0 // pred_check
    _
  $region15: #{concat_norm1d.2} parent=0 // pred_check_branch
    %138 = sbr.rel (0) target = $region17
  $region16: #{concat_norm1d.2} parent=0 // pred_region
    _
  $region17: #{concat_norm1d.2} parent=0 // pred_fallthru
    _
  // Predicated region
  $region18: #{concat_norm1d.2} parent=0 // pred_check
    _
  $region19: #{concat_norm1d.2} parent=0 // pred_check_branch
    %140 = sbr.rel (0) target = $region21
  $region20: #{concat_norm1d.2} parent=0 // pred_region
    _
  $region21: #{concat_norm1d.2} parent=0 // pred_fallthru
    _
  // Predicated region
  $region22: #{concat_norm1d.2} parent=0 // pred_check
    _
  $region23: #{concat_norm1d.2} parent=0 // pred_check_branch
    %142 = sbr.rel (0) target = $region25
  $region24: #{concat_norm1d.2} parent=0 // pred_region
    _
  $region25: #{concat_norm1d.2} parent=0 // pred_fallthru
    _
  // Predicated region
  $region26: #{concat_norm1d.2} parent=0 // pred_check
    _
  $region27: #{concat_norm1d.2} parent=0 // pred_check_branch
    %144 = sbr.rel (0) target = $region29
  $region28: #{concat_norm1d.2} parent=0 // pred_region
    _
  $region29: #{concat_norm1d.2} parent=0 // pred_fallthru
    _

// kernel: concat_norm1d.3
$region0: #{concat_norm1d.3}
  #allocation0 [shape = 'u32[]', space=smem, size = 0x4, offset = 0x4, fixed_abs, tag = 'smem constant byte address 0x4 - core index']
  #allocation1 [shape = 'u32[144,128]{1,0:T(1,128)}', space=vmem, size = 0x12000, scoped, tag = 'internal scratch']
  %s0 = inlined_call_operand.vmem [shape: f32[16,24], index: 0, kind: input, shape index: {}]
  %s1 = inlined_call_operand.vmem [shape: f32[16,8], index: 1, kind: input, shape index: {}]
  %s2 = inlined_call_operand.vmem [shape: f32[24,24], index: 2, kind: input, shape index: {}]
  %s3 = inlined_call_operand.vmem [shape: f32[8,24], index: 3, kind: input, shape index: {}]
  %s4 = inlined_call_operand.vmem [shape: f32[1,24], index: 4, kind: input, shape index: {}]
  %s5 = inlined_call_operand.hbm [shape: f32[16,24], index: 5, kind: output, shape index: {}]
  %s6 = sld [smem:[#allocation0]]
  $region30: #{concat_norm1d.3} parent=0
    _
  %s8 = ssub.s32 1, %s6
  %s9 = scalar_select 0, %s8, %s6
  $region1: #{concat_norm1d.3} parent=0
    #allocation2 [shape = 'u8[8192]{0}', space=vmem, size = 0x2000, scoped, tag = 'output window, operand 0, single buffered']
    #allocation3 [shape = 's32[1]{0}', space=sflag, size = 0x4, scoped, tag = 'scoped memory for concat_norm1d.3']
    %10 = vsyncpa [#allocation3], 0
    // Predicated region
    $region2: #{concat_norm1d.3} parent=1 // pred_check
      _
    $region3: #{concat_norm1d.3} parent=1 // pred_check_branch
      %12 = sbr.rel (0) target = $region5
    $region4: #{concat_norm1d.3} parent=1 // pred_region
      _
    $region5: #{concat_norm1d.3} parent=1 // pred_fallthru
      _
    // Predicated region
    $region6: #{concat_norm1d.3} parent=1 // pred_check
      _
    $region7: #{concat_norm1d.3} parent=1 // pred_check_branch
      %14 = sbr.rel (0) target = $region9
    $region8: #{concat_norm1d.3} parent=1 // pred_region
      _
    $region9: #{concat_norm1d.3} parent=1 // pred_fallthru
      _
    // Predicated region
    $region10: #{concat_norm1d.3} parent=1 // pred_check
      _
    $region11: #{concat_norm1d.3} parent=1 // pred_check_branch
      %16 = sbr.rel (0) target = $region13
    $region12: #{concat_norm1d.3} parent=1 // pred_region
      _
    $region13: #{concat_norm1d.3} parent=1 // pred_fallthru
      _
    // Predicated region
    $region14: #{concat_norm1d.3} parent=1 // pred_check
      _
    $region15: #{concat_norm1d.3} parent=1 // pred_check_branch
      %18 = sbr.rel (0) target = $region17
    $region16: #{concat_norm1d.3} parent=1 // pred_region
      _
    $region17: #{concat_norm1d.3} parent=1 // pred_fallthru
      _
    // Predicated region
    $region18: #{concat_norm1d.3} parent=1 // pred_check
      _
    $region19: #{concat_norm1d.3} parent=1 // pred_check_branch
      %20 = sbr.rel (0) target = $region21
    $region20: #{concat_norm1d.3} parent=1 // pred_region
      _
    $region21: #{concat_norm1d.3} parent=1 // pred_fallthru
      _
    %v21 = vld [vmem:[%s0] sm:$0xff]
    %v22 = vld [vmem:[%s0 + $0x8] sm:$0xff]
    %v23 = vld [vmem:[%s2] sm:$0xff]
    %v24 = vld [vmem:[%s2 + $0x8] sm:$0xff]
    %v25 = vld [vmem:[%s2 + $0x10] sm:$0xff]
    %v26 = vld [vmem:[%s1] sm:$0xff]
    %v27 = vld [vmem:[%s1 + $0x8] sm:$0xff]
    %v28 = vld [vmem:[%s3] sm:$0xff]
    %vm29 = vcmask 64512
    %v31 = vsel %vm29, %v26, 0
    %v34 = vsel %vm29, %v27, 0
    %36 = vmatprep.subr.mxu0 0.0
    %37 = vmatpush1.msra.mxu0 0.0
    %38 = vmatprep.subr.mxu0 0.0
    %39 = vmatpush1.msra.mxu0 0.0
    %40 = vmatprep.subr.mxu0 0.0
    %41 = vmatpush1.msra.mxu0 0.0
    %42 = vmatprep.subr.mxu0 0.0
    %43 = vmatpush1.msra.mxu0 0.0
    %44 = vmatprep.subr.mxu0 0.0
    %45 = vmatpush1.msra.mxu0 0.0
    %46 = vmatprep.subr.mxu0 0.0
    %47 = vmatpush1.msra.mxu0 0.0
    %48 = vmatprep.subr.mxu0 0.0
    %49 = vmatpush1.msra.mxu0 0.0
    %50 = vmatprep.subr.mxu0 0.0
    %51 = vmatpush1.msra.mxu0 0.0
    %52 = vmatprep.subr.mxu0 0.0
    %53 = vmatpush1.msra.mxu0 0.0
    %54 = vmatprep.subr.mxu0 0.0
    %55 = vmatpush1.msra.mxu0 0.0
    %56 = vmatprep.subr.mxu0 0.0
    %57 = vmatpush1.msra.mxu0 0.0
    %58 = vmatprep.subr.mxu0 0.0
    %59 = vmatpush1.msra.mxu0 0.0
    %60 = vmatprep.subr.mxu0 0.0
    %61 = vmatpush1.msra.mxu0 0.0
    %62 = vmatprep.subr.mxu0 0.0
    %63 = vmatpush1.msra.mxu0 0.0
    %64 = vmatprep.subr.mxu0 0.0
    %65 = vmatpush1.msra.mxu0 0.0
    %66 = vmatprep.subr.mxu0 0.0
    %v67 = vand.u32 %v28, 4294901760
    %68 = vmatpush1.msra.mxu0 %v67
    %69 = vmatprep.subr.mxu0 0.0
    %70 = vmatpush2.msra.mxu0 0.0
    %71 = vmatprep.subr.mxu0 0.0
    %72 = vmatpush2.msra.mxu0 0.0
    %73 = vmatprep.subr.mxu0 0.0
    %74 = vmatpush2.msra.mxu0 0.0
    %75 = vmatprep.subr.mxu0 0.0
    %76 = vmatpush2.msra.mxu0 0.0
    %77 = vmatprep.subr.mxu0 0.0
    %78 = vmatpush2.msra.mxu0 0.0
    %79 = vmatprep.subr.mxu0 0.0
    %80 = vmatpush2.msra.mxu0 0.0
    %81 = vmatprep.subr.mxu0 0.0
    %82 = vmatpush2.msra.mxu0 0.0
    %83 = vmatprep.subr.mxu0 0.0
    %84 = vmatpush2.msra.mxu0 0.0
    %85 = vmatprep.subr.mxu0 0.0
    %86 = vmatpush2.msra.mxu0 0.0
    %87 = vmatprep.subr.mxu0 0.0
    %88 = vmatpush2.msra.mxu0 0.0
    %89 = vmatprep.subr.mxu0 0.0
    %90 = vmatpush2.msra.mxu0 0.0
    %91 = vmatprep.subr.mxu0 0.0
    %92 = vmatpush2.msra.mxu0 0.0
    %93 = vmatprep.subr.mxu0 0.0
    %94 = vmatpush2.msra.mxu0 0.0
    %95 = vmatprep.subr.mxu0 0.0
    %96 = vmatpush2.msra.mxu0 0.0
    %97 = vmatprep.subr.mxu0 0.0
    %98 = vmatpush2.msra.mxu0 0.0
    %99 = vmatprep.subr.mxu0 0.0
    %100 = vmatpush2.msra.mxu0 0.0
    %101 = vmatprep.mubr.f32.mxu0 0.0
    %v102 = vand.u32 %v31, 4294901760
    %v103 = vsub.f32 %v31, %v102
    %v104 = vand.u32 %v103, 4294901760
    %v105 = vsub.f32 %v103, %v104
    %v106 = vand.u32 %v105, 4294901760
    %107 = vmatmul.mubr.f32.gmra.mxu0 %v106
    %v108 = vpop.f32.mrf.mxu0
    %v109 = vadd.f32 0.0, %v108
    %v110 = vpop.f32.mrf.mxu0
    %111 = vmatprep.mubr.f32.mxu0 0.0
    %v112 = vand.u32 %v34, 4294901760
    %v113 = vsub.f32 %v34, %v112
    %v114 = vand.u32 %v113, 4294901760
    %v115 = vsub.f32 %v113, %v114
    %v116 = vand.u32 %v115, 4294901760
    %117 = vmatmul.mubr.f32.gmra.mxu0 %v116
    %v118 = vpop.f32.mrf.mxu0
    %v119 = vadd.f32 0.0, %v118
    %v120 = vpop.f32.mrf.mxu0
    %121 = vdwg.mxu0
    %122 = vmatprep.subr.mxu0 0.0
    %123 = vmatpush1.msra.mxu0 0.0
    %124 = vmatprep.subr.mxu0 0.0
    %125 = vmatpush1.msra.mxu0 0.0
    %126 = vmatprep.subr.mxu0 0.0
    %127 = vmatpush1.msra.mxu0 0.0
    %128 = vmatprep.subr.mxu0 0.0
    %129 = vmatpush1.msra.mxu0 0.0
    %130 = vmatprep.subr.mxu0 0.0
    %131 = vmatpush1.msra.mxu0 0.0
    %132 = vmatprep.subr.mxu0 0.0
    %133 = vmatpush1.msra.mxu0 0.0
    %134 = vmatprep.subr.mxu0 0.0
    %135 = vmatpush1.msra.mxu0 0.0
    %136 = vmatprep.subr.mxu0 0.0
    %137 = vmatpush1.msra.mxu0 0.0
    %138 = vmatprep.subr.mxu0 0.0
    %139 = vmatpush1.msra.mxu0 0.0
    %140 = vmatprep.subr.mxu0 0.0
    %141 = vmatpush1.msra.mxu0 0.0
    %142 = vmatprep.subr.mxu0 0.0
    %143 = vmatpush1.msra.mxu0 0.0
    %144 = vmatprep.subr.mxu0 0.0
    %145 = vmatpush1.msra.mxu0 0.0
    %146 = vmatprep.subr.mxu0 0.0
    %147 = vmatpush1.msra.mxu0 0.0
    %148 = vmatprep.subr.mxu0 0.0
    %149 = vmatpush1.msra.mxu0 0.0
    %150 = vmatprep.subr.mxu0 0.0
    %151 = vmatpush1.msra.mxu0 0.0
    %152 = vmatprep.subr.mxu0 0.0
    %v153 = vand.u32 %v28, 4294901760
    %v154 = vsub.f32 %v28, %v153
    %v155 = vand.u32 %v154, 4294901760
    %v156 = vsub.f32 %v154, %v155
    %v157 = vand.u32 %v156, 4294901760
    %158 = vmatpush1.msra.mxu0 %v157
    %159 = vmatprep.subr.mxu0 0.0
    %160 = vmatpush2.msra.mxu0 0.0
    %161 = vmatprep.subr.mxu0 0.0
    %162 = vmatpush2.msra.mxu0 0.0
    %163 = vmatprep.subr.mxu0 0.0
    %164 = vmatpush2.msra.mxu0 0.0
    %165 = vmatprep.subr.mxu0 0.0
    %166 = vmatpush2.msra.mxu0 0.0
    %167 = vmatprep.subr.mxu0 0.0
    %168 = vmatpush2.msra.mxu0 0.0
    %169 = vmatprep.subr.mxu0 0.0
    %170 = vmatpush2.msra.mxu0 0.0
    %171 = vmatprep.subr.mxu0 0.0
    %172 = vmatpush2.msra.mxu0 0.0
    %173 = vmatprep.subr.mxu0 0.0
    %174 = vmatpush2.msra.mxu0 0.0
    %175 = vmatprep.subr.mxu0 0.0
    %176 = vmatpush2.msra.mxu0 0.0
    %177 = vmatprep.subr.mxu0 0.0
    %178 = vmatpush2.msra.mxu0 0.0
    %179 = vmatprep.subr.mxu0 0.0
    %180 = vmatpush2.msra.mxu0 0.0
    %181 = vmatprep.subr.mxu0 0.0
    %182 = vmatpush2.msra.mxu0 0.0
    %183 = vmatprep.subr.mxu0 0.0
    %184 = vmatpush2.msra.mxu0 0.0
    %185 = vmatprep.subr.mxu0 0.0
    %186 = vmatpush2.msra.mxu0 0.0
    %187 = vmatprep.subr.mxu0 0.0
    %188 = vmatpush2.msra.mxu0 0.0
    %189 = vmatprep.subr.mxu0 0.0
    %190 = vmatpush2.msra.mxu0 0.0
    %191 = vmatprep.mubr.f32.mxu0 0.0
    %v192 = vand.u32 %v31, 4294901760
    %193 = vmatmul.mubr.f32.gmra.mxu0 %v192
    %v194 = vpop.f32.mrf.mxu0
    %v195 = vadd.f32 %v109, %v194
    %v196 = vpop.f32.mrf.mxu0
    %197 = vmatprep.mubr.f32.mxu0 0.0
    %v198 = vand.u32 %v34, 4294901760
    %199 = vmatmul.mubr.f32.gmra.mxu0 %v198
    %v200 = vpop.f32.mrf.mxu0
    %v201 = vadd.f32 %v119, %v200
    %v202 = vpop.f32.mrf.mxu0
    %203 = vdwg.mxu0
    %204 = vmatprep.subr.mxu0 0.0
    %205 = vmatpush1.msra.mxu0 0.0
    %206 = vmatprep.subr.mxu0 0.0
    %207 = vmatpush1.msra.mxu0 0.0
    %208 = vmatprep.subr.mxu0 0.0
    %209 = vmatpush1.msra.mxu0 0.0
    %210 = vmatprep.subr.mxu0 0.0
    %211 = vmatpush1.msra.mxu0 0.0
    %212 = vmatprep.subr.mxu0 0.0
    %213 = vmatpush1.msra.mxu0 0.0
    %214 = vmatprep.subr.mxu0 0.0
    %215 = vmatpush1.msra.mxu0 0.0
    %216 = vmatprep.subr.mxu0 0.0
    %217 = vmatpush1.msra.mxu0 0.0
    %218 = vmatprep.subr.mxu0 0.0
    %219 = vmatpush1.msra.mxu0 0.0
    %220 = vmatprep.subr.mxu0 0.0
    %221 = vmatpush1.msra.mxu0 0.0
    %222 = vmatprep.subr.mxu0 0.0
    %223 = vmatpush1.msra.mxu0 0.0
    %224 = vmatprep.subr.mxu0 0.0
    %225 = vmatpush1.msra.mxu0 0.0
    %226 = vmatprep.subr.mxu0 0.0
    %227 = vmatpush1.msra.mxu0 0.0
    %228 = vmatprep.subr.mxu0 0.0
    %229 = vmatpush1.msra.mxu0 0.0
    %230 = vmatprep.subr.mxu0 0.0
    %231 = vmatpush1.msra.mxu0 0.0
    %232 = vmatprep.subr.mxu0 0.0
    %233 = vmatpush1.msra.mxu0 0.0
    %234 = vmatprep.subr.mxu0 0.0
    %v235 = vand.u32 %v28, 4294901760
    %v236 = vsub.f32 %v28, %v235
    %237 = vmatpush1.msra.mxu0 %v236
    %238 = vmatprep.subr.mxu0 0.0
    %239 = vmatpush2.msra.mxu0 0.0
    %240 = vmatprep.subr.mxu0 0.0
    %241 = vmatpush2.msra.mxu0 0.0
    %242 = vmatprep.subr.mxu0 0.0
    %243 = vmatpush2.msra.mxu0 0.0
    %244 = vmatprep.subr.mxu0 0.0
    %245 = vmatpush2.msra.mxu0 0.0
    %246 = vmatprep.subr.mxu0 0.0
    %247 = vmatpush2.msra.mxu0 0.0
    %248 = vmatprep.subr.mxu0 0.0
    %249 = vmatpush2.msra.mxu0 0.0
    %250 = vmatprep.subr.mxu0 0.0
    %251 = vmatpush2.msra.mxu0 0.0
    %252 = vmatprep.subr.mxu0 0.0
    %253 = vmatpush2.msra.mxu0 0.0
    %254 = vmatprep.subr.mxu0 0.0
    %255 = vmatpush2.msra.mxu0 0.0
    %256 = vmatprep.subr.mxu0 0.0
    %257 = vmatpush2.msra.mxu0 0.0
    %258 = vmatprep.subr.mxu0 0.0
    %259 = vmatpush2.msra.mxu0 0.0
    %260 = vmatprep.subr.mxu0 0.0
    %261 = vmatpush2.msra.mxu0 0.0
    %262 = vmatprep.subr.mxu0 0.0
    %263 = vmatpush2.msra.mxu0 0.0
    %264 = vmatprep.subr.mxu0 0.0
    %265 = vmatpush2.msra.mxu0 0.0
    %266 = vmatprep.subr.mxu0 0.0
    %267 = vmatpush2.msra.mxu0 0.0
    %268 = vmatprep.subr.mxu0 0.0
    %269 = vmatpush2.msra.mxu0 0.0
    %270 = vmatprep.mubr.f32.mxu0 0.0
    %v271 = vand.u32 %v31, 4294901760
    %v272 = vsub.f32 %v31, %v271
    %273 = vmatmul.mubr.f32.gmra.mxu0 %v272
    %v274 = vpop.f32.mrf.mxu0
    %v275 = vadd.f32 %v195, %v274
    %v276 = vpop.f32.mrf.mxu0
    %277 = vmatprep.mubr.f32.mxu0 0.0
    %v278 = vand.u32 %v34, 4294901760
    %v279 = vsub.f32 %v34, %v278
    %280 = vmatmul.mubr.f32.gmra.mxu0 %v279
    %v281 = vpop.f32.mrf.mxu0
    %v282 = vadd.f32 %v201, %v281
    %v283 = vpop.f32.mrf.mxu0
    %284 = vdwg.mxu0
    %285 = vmatprep.subr.mxu0 0.0
    %286 = vmatpush1.msra.mxu0 0.0
    %287 = vmatprep.subr.mxu0 0.0
    %288 = vmatpush1.msra.mxu0 0.0
    %289 = vmatprep.subr.mxu0 0.0
    %290 = vmatpush1.msra.mxu0 0.0
    %291 = vmatprep.subr.mxu0 0.0
    %292 = vmatpush1.msra.mxu0 0.0
    %293 = vmatprep.subr.mxu0 0.0
    %294 = vmatpush1.msra.mxu0 0.0
    %295 = vmatprep.subr.mxu0 0.0
    %296 = vmatpush1.msra.mxu0 0.0
    %297 = vmatprep.subr.mxu0 0.0
    %298 = vmatpush1.msra.mxu0 0.0
    %299 = vmatprep.subr.mxu0 0.0
    %300 = vmatpush1.msra.mxu0 0.0
    %301 = vmatprep.subr.mxu0 0.0
    %302 = vmatpush1.msra.mxu0 0.0
    %303 = vmatprep.subr.mxu0 0.0
    %304 = vmatpush1.msra.mxu0 0.0
    %305 = vmatprep.subr.mxu0 0.0
    %306 = vmatpush1.msra.mxu0 0.0
    %307 = vmatprep.subr.mxu0 0.0
    %308 = vmatpush1.msra.mxu0 0.0
    %309 = vmatprep.subr.mxu0 0.0
    %310 = vmatpush1.msra.mxu0 0.0
    %311 = vmatprep.subr.mxu0 0.0
    %312 = vmatpush1.msra.mxu0 0.0
    %313 = vmatprep.subr.mxu0 0.0
    %314 = vmatpush1.msra.mxu0 0.0
    %315 = vmatprep.subr.mxu0 0.0
    %v316 = vand.u32 %v28, 4294901760
    %317 = vmatpush1.msra.mxu0 %v316
    %318 = vmatprep.subr.mxu0 0.0
    %319 = vmatpush2.msra.mxu0 0.0
    %320 = vmatprep.subr.mxu0 0.0
    %321 = vmatpush2.msra.mxu0 0.0
    %322 = vmatprep.subr.mxu0 0.0
    %323 = vmatpush2.msra.mxu0 0.0
    %324 = vmatprep.subr.mxu0 0.0
    %325 = vmatpush2.msra.mxu0 0.0
    %326 = vmatprep.subr.mxu0 0.0
    %327 = vmatpush2.msra.mxu0 0.0
    %328 = vmatprep.subr.mxu0 0.0
    %329 = vmatpush2.msra.mxu0 0.0
    %330 = vmatprep.subr.mxu0 0.0
    %331 = vmatpush2.msra.mxu0 0.0
    %332 = vmatprep.subr.mxu0 0.0
    %333 = vmatpush2.msra.mxu0 0.0
    %334 = vmatprep.subr.mxu0 0.0
    %335 = vmatpush2.msra.mxu0 0.0
    %336 = vmatprep.subr.mxu0 0.0
    %337 = vmatpush2.msra.mxu0 0.0
    %338 = vmatprep.subr.mxu0 0.0
    %339 = vmatpush2.msra.mxu0 0.0
    %340 = vmatprep.subr.mxu0 0.0
    %341 = vmatpush2.msra.mxu0 0.0
    %342 = vmatprep.subr.mxu0 0.0
    %343 = vmatpush2.msra.mxu0 0.0
    %344 = vmatprep.subr.mxu0 0.0
    %345 = vmatpush2.msra.mxu0 0.0
    %346 = vmatprep.subr.mxu0 0.0
    %347 = vmatpush2.msra.mxu0 0.0
    %348 = vmatprep.subr.mxu0 0.0
    %349 = vmatpush2.msra.mxu0 0.0
    %350 = vmatprep.mubr.f32.mxu0 0.0
    %v351 = vand.u32 %v31, 4294901760
    %v352 = vsub.f32 %v31, %v351
    %v353 = vand.u32 %v352, 4294901760
    %354 = vmatmul.mubr.f32.gmra.mxu0 %v353
    %v355 = vpop.f32.mrf.mxu0
    %v356 = vadd.f32 %v275, %v355
    %v357 = vpop.f32.mrf.mxu0
    %358 = vmatprep.mubr.f32.mxu0 0.0
    %v359 = vand.u32 %v34, 4294901760
    %v360 = vsub.f32 %v34, %v359
    %v361 = vand.u32 %v360, 4294901760
    %362 = vmatmul.mubr.f32.gmra.mxu0 %v361
    %v363 = vpop.f32.mrf.mxu0
    %v364 = vadd.f32 %v282, %v363
    %v365 = vpop.f32.mrf.mxu0
    %366 = vdwg.mxu0
    %367 = vmatprep.subr.mxu0 0.0
    %368 = vmatpush1.msra.mxu0 0.0
    %369 = vmatprep.subr.mxu0 0.0
    %370 = vmatpush1.msra.mxu0 0.0
    %371 = vmatprep.subr.mxu0 0.0
    %372 = vmatpush1.msra.mxu0 0.0
    %373 = vmatprep.subr.mxu0 0.0
    %374 = vmatpush1.msra.mxu0 0.0
    %375 = vmatprep.subr.mxu0 0.0
    %376 = vmatpush1.msra.mxu0 0.0
    %377 = vmatprep.subr.mxu0 0.0
    %378 = vmatpush1.msra.mxu0 0.0
    %379 = vmatprep.subr.mxu0 0.0
    %380 = vmatpush1.msra.mxu0 0.0
    %381 = vmatprep.subr.mxu0 0.0
    %382 = vmatpush1.msra.mxu0 0.0
    %383 = vmatprep.subr.mxu0 0.0
    %384 = vmatpush1.msra.mxu0 0.0
    %385 = vmatprep.subr.mxu0 0.0
    %386 = vmatpush1.msra.mxu0 0.0
    %387 = vmatprep.subr.mxu0 0.0
    %388 = vmatpush1.msra.mxu0 0.0
    %389 = vmatprep.subr.mxu0 0.0
    %390 = vmatpush1.msra.mxu0 0.0
    %391 = vmatprep.subr.mxu0 0.0
    %392 = vmatpush1.msra.mxu0 0.0
    %393 = vmatprep.subr.mxu0 0.0
    %394 = vmatpush1.msra.mxu0 0.0
    %395 = vmatprep.subr.mxu0 0.0
    %396 = vmatpush1.msra.mxu0 0.0
    %397 = vmatprep.subr.mxu0 0.0
    %v398 = vand.u32 %v28, 4294901760
    %v399 = vsub.f32 %v28, %v398
    %v400 = vand.u32 %v399, 4294901760
    %401 = vmatpush1.msra.mxu0 %v400
    %402 = vmatprep.subr.mxu0 0.0
    %403 = vmatpush2.msra.mxu0 0.0
    %404 = vmatprep.subr.mxu0 0.0
    %405 = vmatpush2.msra.mxu0 0.0
    %406 = vmatprep.subr.mxu0 0.0
    %407 = vmatpush2.msra.mxu0 0.0
    %408 = vmatprep.subr.mxu0 0.0
    %409 = vmatpush2.msra.mxu0 0.0
    %410 = vmatprep.subr.mxu0 0.0
    %411 = vmatpush2.msra.mxu0 0.0
    %412 = vmatprep.subr.mxu0 0.0
    %413 = vmatpush2.msra.mxu0 0.0
    %414 = vmatprep.subr.mxu0 0.0
    %415 = vmatpush2.msra.mxu0 0.0
    %416 = vmatprep.subr.mxu0 0.0
    %417 = vmatpush2.msra.mxu0 0.0
    %418 = vmatprep.subr.mxu0 0.0
    %419 = vmatpush2.msra.mxu0 0.0
    %420 = vmatprep.subr.mxu0 0.0
    %421 = vmatpush2.msra.mxu0 0.0
    %422 = vmatprep.subr.mxu0 0.0
    %423 = vmatpush2.msra.mxu0 0.0
    %424 = vmatprep.subr.mxu0 0.0
    %425 = vmatpush2.msra.mxu0 0.0
    %426 = vmatprep.subr.mxu0 0.0
    %427 = vmatpush2.msra.mxu0 0.0
    %428 = vmatprep.subr.mxu0 0.0
    %429 = vmatpush2.msra.mxu0 0.0
    %430 = vmatprep.subr.mxu0 0.0
    %431 = vmatpush2.msra.mxu0 0.0
    %432 = vmatprep.subr.mxu0 0.0
    %433 = vmatpush2.msra.mxu0 0.0
    %434 = vmatprep.mubr.f32.mxu0 0.0
    %v435 = vand.u32 %v31, 4294901760
    %436 = vmatmul.mubr.f32.gmra.mxu0 %v435
    %v437 = vpop.f32.mrf.mxu0
    %v438 = vadd.f32 %v356, %v437
    %v439 = vpop.f32.mrf.mxu0
    %440 = vmatprep.mubr.f32.mxu0 0.0
    %v441 = vand.u32 %v34, 4294901760
    %442 = vmatmul.mubr.f32.gmra.mxu0 %v441
    %v443 = vpop.f32.mrf.mxu0
    %v444 = vadd.f32 %v364, %v443
    %v445 = vpop.f32.mrf.mxu0
    %446 = vdwg.mxu0
    %447 = vmatprep.subr.mxu0 0.0
    %448 = vmatpush1.msra.mxu0 0.0
    %449 = vmatprep.subr.mxu0 0.0
    %450 = vmatpush1.msra.mxu0 0.0
    %451 = vmatprep.subr.mxu0 0.0
    %452 = vmatpush1.msra.mxu0 0.0
    %453 = vmatprep.subr.mxu0 0.0
    %454 = vmatpush1.msra.mxu0 0.0
    %455 = vmatprep.subr.mxu0 0.0
    %456 = vmatpush1.msra.mxu0 0.0
    %457 = vmatprep.subr.mxu0 0.0
    %458 = vmatpush1.msra.mxu0 0.0
    %459 = vmatprep.subr.mxu0 0.0
    %460 = vmatpush1.msra.mxu0 0.0
    %461 = vmatprep.subr.mxu0 0.0
    %462 = vmatpush1.msra.mxu0 0.0
    %463 = vmatprep.subr.mxu0 0.0
    %464 = vmatpush1.msra.mxu0 0.0
    %465 = vmatprep.subr.mxu0 0.0
    %466 = vmatpush1.msra.mxu0 0.0
    %467 = vmatprep.subr.mxu0 0.0
    %468 = vmatpush1.msra.mxu0 0.0
    %469 = vmatprep.subr.mxu0 0.0
    %470 = vmatpush1.msra.mxu0 0.0
    %471 = vmatprep.subr.mxu0 0.0
    %472 = vmatpush1.msra.mxu0 0.0
    %473 = vmatprep.subr.mxu0 0.0
    %474 = vmatpush1.msra.mxu0 0.0
    %475 = vmatprep.subr.mxu0 0.0
    %476 = vmatpush1.msra.mxu0 0.0
    %477 = vmatprep.subr.mxu0 0.0
    %v478 = vand.u32 %v28, 4294901760
    %479 = vmatpush1.msra.mxu0 %v478
    %480 = vmatprep.subr.mxu0 0.0
    %481 = vmatpush2.msra.mxu0 0.0
    %482 = vmatprep.subr.mxu0 0.0
    %483 = vmatpush2.msra.mxu0 0.0
    %484 = vmatprep.subr.mxu0 0.0
    %485 = vmatpush2.msra.mxu0 0.0
    %486 = vmatprep.subr.mxu0 0.0
    %487 = vmatpush2.msra.mxu0 0.0
    %488 = vmatprep.subr.mxu0 0.0
    %489 = vmatpush2.msra.mxu0 0.0
    %490 = vmatprep.subr.mxu0 0.0
    %491 = vmatpush2.msra.mxu0 0.0
    %492 = vmatprep.subr.mxu0 0.0
    %493 = vmatpush2.msra.mxu0 0.0
    %494 = vmatprep.subr.mxu0 0.0
    %495 = vmatpush2.msra.mxu0 0.0
    %496 = vmatprep.subr.mxu0 0.0
    %497 = vmatpush2.msra.mxu0 0.0
    %498 = vmatprep.subr.mxu0 0.0
    %499 = vmatpush2.msra.mxu0 0.0
    %500 = vmatprep.subr.mxu0 0.0
    %501 = vmatpush2.msra.mxu0 0.0
    %502 = vmatprep.subr.mxu0 0.0
    %503 = vmatpush2.msra.mxu0 0.0
    %504 = vmatprep.subr.mxu0 0.0
    %505 = vmatpush2.msra.mxu0 0.0
    %506 = vmatprep.subr.mxu0 0.0
    %507 = vmatpush2.msra.mxu0 0.0
    %508 = vmatprep.subr.mxu0 0.0
    %509 = vmatpush2.msra.mxu0 0.0
    %510 = vmatprep.subr.mxu0 0.0
    %511 = vmatpush2.msra.mxu0 0.0
    %512 = vmatprep.mubr.f32.mxu0 0.0
    %v513 = vand.u32 %v31, 4294901760
    %514 = vmatmul.mubr.f32.gmra.mxu0 %v513
    %v515 = vpop.f32.mrf.mxu0
    %v516 = vadd.f32 %v438, %v515
    %v517 = vpop.f32.mrf.mxu0
    %518 = vmatprep.mubr.f32.mxu0 0.0
    %v519 = vand.u32 %v34, 4294901760
    %520 = vmatmul.mubr.f32.gmra.mxu0 %v519
    %v521 = vpop.f32.mrf.mxu0
    %v522 = vadd.f32 %v444, %v521
    %v523 = vpop.f32.mrf.mxu0
    %524 = vdwg.mxu0
    %vm525 = vcmask 195584
    %v527 = vsel %vm525, %v21, 0
    %v530 = vsel %vm525, %v22, 0
    %532 = vmatprep.subr.mxu0 0.0
    %533 = vmatpush1.msra.mxu0 0.0
    %534 = vmatprep.subr.mxu0 0.0
    %535 = vmatpush1.msra.mxu0 0.0
    %536 = vmatprep.subr.mxu0 0.0
    %537 = vmatpush1.msra.mxu0 0.0
    %538 = vmatprep.subr.mxu0 0.0
    %539 = vmatpush1.msra.mxu0 0.0
    %540 = vmatprep.subr.mxu0 0.0
    %541 = vmatpush1.msra.mxu0 0.0
    %542 = vmatprep.subr.mxu0 0.0
    %543 = vmatpush1.msra.mxu0 0.0
    %544 = vmatprep.subr.mxu0 0.0
    %545 = vmatpush1.msra.mxu0 0.0
    %546 = vmatprep.subr.mxu0 0.0
    %547 = vmatpush1.msra.mxu0 0.0
    %548 = vmatprep.subr.mxu0 0.0
    %549 = vmatpush1.msra.mxu0 0.0
    %550 = vmatprep.subr.mxu0 0.0
    %551 = vmatpush1.msra.mxu0 0.0
    %552 = vmatprep.subr.mxu0 0.0
    %553 = vmatpush1.msra.mxu0 0.0
    %554 = vmatprep.subr.mxu0 0.0
    %555 = vmatpush1.msra.mxu0 0.0
    %556 = vmatprep.subr.mxu0 0.0
    %557 = vmatpush1.msra.mxu0 0.0
    %558 = vmatprep.subr.mxu0 0.0
    %v559 = vand.u32 %v25, 4294901760
    %560 = vmatpush1.msra.mxu0 %v559
    %561 = vmatprep.subr.mxu0 0.0
    %v562 = vand.u32 %v24, 4294901760
    %563 = vmatpush1.msra.mxu0 %v562
    %564 = vmatprep.subr.mxu0 0.0
    %v565 = vand.u32 %v23, 4294901760
    %566 = vmatpush1.msra.mxu0 %v565
    %567 = vmatprep.subr.mxu0 0.0
    %568 = vmatpush2.msra.mxu0 0.0
    %569 = vmatprep.subr.mxu0 0.0
    %570 = vmatpush2.msra.mxu0 0.0
    %571 = vmatprep.subr.mxu0 0.0
    %572 = vmatpush2.msra.mxu0 0.0
    %573 = vmatprep.subr.mxu0 0.0
    %574 = vmatpush2.msra.mxu0 0.0
    %575 = vmatprep.subr.mxu0 0.0
    %576 = vmatpush2.msra.mxu0 0.0
    %577 = vmatprep.subr.mxu0 0.0
    %578 = vmatpush2.msra.mxu0 0.0
    %579 = vmatprep.subr.mxu0 0.0
    %580 = vmatpush2.msra.mxu0 0.0
    %581 = vmatprep.subr.mxu0 0.0
    %582 = vmatpush2.msra.mxu0 0.0
    %583 = vmatprep.subr.mxu0 0.0
    %584 = vmatpush2.msra.mxu0 0.0
    %585 = vmatprep.subr.mxu0 0.0
    %586 = vmatpush2.msra.mxu0 0.0
    %587 = vmatprep.subr.mxu0 0.0
    %588 = vmatpush2.msra.mxu0 0.0
    %589 = vmatprep.subr.mxu0 0.0
    %590 = vmatpush2.msra.mxu0 0.0
    %591 = vmatprep.subr.mxu0 0.0
    %592 = vmatpush2.msra.mxu0 0.0
    %593 = vmatprep.subr.mxu0 0.0
    %594 = vmatpush2.msra.mxu0 0.0
    %595 = vmatprep.subr.mxu0 0.0
    %596 = vmatpush2.msra.mxu0 0.0
    %597 = vmatprep.subr.mxu0 0.0
    %598 = vmatpush2.msra.mxu0 0.0
    %599 = vmatprep.mubr.f32.mxu0 0.0
    %v600 = vand.u32 %v527, 4294901760
    %v601 = vsub.f32 %v527, %v600
    %v602 = vand.u32 %v601, 4294901760
    %v603 = vsub.f32 %v601, %v602
    %v604 = vand.u32 %v603, 4294901760
    %605 = vmatmul.mubr.f32.gmra.mxu0 %v604
    %v606 = vpop.f32.mrf.mxu0
    %v607 = vadd.f32 %v516, %v606
    %v608 = vpop.f32.mrf.mxu0
    %609 = vmatprep.mubr.f32.mxu0 0.0
    %v610 = vand.u32 %v530, 4294901760
    %v611 = vsub.f32 %v530, %v610
    %v612 = vand.u32 %v611, 4294901760
    %v613 = vsub.f32 %v611, %v612
    %v614 = vand.u32 %v613, 4294901760
    %615 = vmatmul.mubr.f32.gmra.mxu0 %v614
    %v616 = vpop.f32.mrf.mxu0
    %v617 = vadd.f32 %v522, %v616
    %v618 = vpop.f32.mrf.mxu0
    %619 = vdwg.mxu0
    %620 = vmatprep.subr.mxu0 0.0
    %621 = vmatpush1.msra.mxu0 0.0
    %622 = vmatprep.subr.mxu0 0.0
    %623 = vmatpush1.msra.mxu0 0.0
    %624 = vmatprep.subr.mxu0 0.0
    %625 = vmatpush1.msra.mxu0 0.0
    %626 = vmatprep.subr.mxu0 0.0
    %627 = vmatpush1.msra.mxu0 0.0
    %628 = vmatprep.subr.mxu0 0.0
    %629 = vmatpush1.msra.mxu0 0.0
    %630 = vmatprep.subr.mxu0 0.0
    %631 = vmatpush1.msra.mxu0 0.0
    %632 = vmatprep.subr.mxu0 0.0
    %633 = vmatpush1.msra.mxu0 0.0
    %634 = vmatprep.subr.mxu0 0.0
    %635 = vmatpush1.msra.mxu0 0.0
    %636 = vmatprep.subr.mxu0 0.0
    %637 = vmatpush1.msra.mxu0 0.0
    %638 = vmatprep.subr.mxu0 0.0
    %639 = vmatpush1.msra.mxu0 0.0
    %640 = vmatprep.subr.mxu0 0.0
    %641 = vmatpush1.msra.mxu0 0.0
    %642 = vmatprep.subr.mxu0 0.0
    %643 = vmatpush1.msra.mxu0 0.0
    %644 = vmatprep.subr.mxu0 0.0
    %645 = vmatpush1.msra.mxu0 0.0
    %646 = vmatprep.subr.mxu0 0.0
    %v647 = vand.u32 %v25, 4294901760
    %v648 = vsub.f32 %v25, %v647
    %v649 = vand.u32 %v648, 4294901760
    %v650 = vsub.f32 %v648, %v649
    %v651 = vand.u32 %v650, 4294901760
    %652 = vmatpush1.msra.mxu0 %v651
    %653 = vmatprep.subr.mxu0 0.0
    %v654 = vand.u32 %v24, 4294901760
    %v655 = vsub.f32 %v24, %v654
    %v656 = vand.u32 %v655, 4294901760
    %v657 = vsub.f32 %v655, %v656
    %v658 = vand.u32 %v657, 4294901760
    %659 = vmatpush1.msra.mxu0 %v658
    %660 = vmatprep.subr.mxu0 0.0
    %v661 = vand.u32 %v23, 4294901760
    %v662 = vsub.f32 %v23, %v661
    %v663 = vand.u32 %v662, 4294901760
    %v664 = vsub.f32 %v662, %v663
    %v665 = vand.u32 %v664, 4294901760
    %666 = vmatpush1.msra.mxu0 %v665
    %667 = vmatprep.subr.mxu0 0.0
    %668 = vmatpush2.msra.mxu0 0.0
    %669 = vmatprep.subr.mxu0 0.0
    %670 = vmatpush2.msra.mxu0 0.0
    %671 = vmatprep.subr.mxu0 0.0
    %672 = vmatpush2.msra.mxu0 0.0
    %673 = vmatprep.subr.mxu0 0.0
    %674 = vmatpush2.msra.mxu0 0.0
    %675 = vmatprep.subr.mxu0 0.0
    %676 = vmatpush2.msra.mxu0 0.0
    %677 = vmatprep.subr.mxu0 0.0
    %678 = vmatpush2.msra.mxu0 0.0
    %679 = vmatprep.subr.mxu0 0.0
    %680 = vmatpush2.msra.mxu0 0.0
    %681 = vmatprep.subr.mxu0 0.0
    %682 = vmatpush2.msra.mxu0 0.0
    %683 = vmatprep.subr.mxu0 0.0
    %684 = vmatpush2.msra.mxu0 0.0
    %685 = vmatprep.subr.mxu0 0.0
    %686 = vmatpush2.msra.mxu0 0.0
    %687 = vmatprep.subr.mxu0 0.0
    %688 = vmatpush2.msra.mxu0 0.0
    %689 = vmatprep.subr.mxu0 0.0
    %690 = vmatpush2.msra.mxu0 0.0
    %691 = vmatprep.subr.mxu0 0.0
    %692 = vmatpush2.msra.mxu0 0.0
    %693 = vmatprep.subr.mxu0 0.0
    %694 = vmatpush2.msra.mxu0 0.0
    %695 = vmatprep.subr.mxu0 0.0
    %696 = vmatpush2.msra.mxu0 0.0
    %697 = vmatprep.subr.mxu0 0.0
    %698 = vmatpush2.msra.mxu0 0.0
    %699 = vmatprep.mubr.f32.mxu0 0.0
    %v700 = vand.u32 %v527, 4294901760
    %701 = vmatmul.mubr.f32.gmra.mxu0 %v700
    %v702 = vpop.f32.mrf.mxu0
    %v703 = vadd.f32 %v607, %v702
    %v704 = vpop.f32.mrf.mxu0
    %705 = vmatprep.mubr.f32.mxu0 0.0
    %v706 = vand.u32 %v530, 4294901760
    %707 = vmatmul.mubr.f32.gmra.mxu0 %v706
    %v708 = vpop.f32.mrf.mxu0
    %v709 = vadd.f32 %v617, %v708
    %v710 = vpop.f32.mrf.mxu0
    %711 = vdwg.mxu0
    %712 = vmatprep.subr.mxu0 0.0
    %713 = vmatpush1.msra.mxu0 0.0
    %714 = vmatprep.subr.mxu0 0.0
    %715 = vmatpush1.msra.mxu0 0.0
    %716 = vmatprep.subr.mxu0 0.0
    %717 = vmatpush1.msra.mxu0 0.0
    %718 = vmatprep.subr.mxu0 0.0
    %719 = vmatpush1.msra.mxu0 0.0
    %720 = vmatprep.subr.mxu0 0.0
    %721 = vmatpush1.msra.mxu0 0.0
    %722 = vmatprep.subr.mxu0 0.0
    %723 = vmatpush1.msra.mxu0 0.0
    %724 = vmatprep.subr.mxu0 0.0
    %725 = vmatpush1.msra.mxu0 0.0
    %726 = vmatprep.subr.mxu0 0.0
    %727 = vmatpush1.msra.mxu0 0.0
    %728 = vmatprep.subr.mxu0 0.0
    %729 = vmatpush1.msra.mxu0 0.0
    %730 = vmatprep.subr.mxu0 0.0
    %731 = vmatpush1.msra.mxu0 0.0
    %732 = vmatprep.subr.mxu0 0.0
    %733 = vmatpush1.msra.mxu0 0.0
    %734 = vmatprep.subr.mxu0 0.0
    %735 = vmatpush1.msra.mxu0 0.0
    %736 = vmatprep.subr.mxu0 0.0
    %737 = vmatpush1.msra.mxu0 0.0
    %738 = vmatprep.subr.mxu0 0.0
    %v739 = vand.u32 %v25, 4294901760
    %v740 = vsub.f32 %v25, %v739
    %741 = vmatpush1.msra.mxu0 %v740
    %742 = vmatprep.subr.mxu0 0.0
    %v743 = vand.u32 %v24, 4294901760
    %v744 = vsub.f32 %v24, %v743
    %745 = vmatpush1.msra.mxu0 %v744
    %746 = vmatprep.subr.mxu0 0.0
    %v747 = vand.u32 %v23, 4294901760
    %v748 = vsub.f32 %v23, %v747
    %749 = vmatpush1.msra.mxu0 %v748
    %750 = vmatprep.subr.mxu0 0.0
    %751 = vmatpush2.msra.mxu0 0.0
    %752 = vmatprep.subr.mxu0 0.0
    %753 = vmatpush2.msra.mxu0 0.0
    %754 = vmatprep.subr.mxu0 0.0
    %755 = vmatpush2.msra.mxu0 0.0
    %756 = vmatprep.subr.mxu0 0.0
    %757 = vmatpush2.msra.mxu0 0.0
    %758 = vmatprep.subr.mxu0 0.0
    %759 = vmatpush2.msra.mxu0 0.0
    %760 = vmatprep.subr.mxu0 0.0
    %761 = vmatpush2.msra.mxu0 0.0
    %762 = vmatprep.subr.mxu0 0.0
    %763 = vmatpush2.msra.mxu0 0.0
    %764 = vmatprep.subr.mxu0 0.0
    %765 = vmatpush2.msra.mxu0 0.0
    %766 = vmatprep.subr.mxu0 0.0
    %767 = vmatpush2.msra.mxu0 0.0
    %768 = vmatprep.subr.mxu0 0.0
    %769 = vmatpush2.msra.mxu0 0.0
    %770 = vmatprep.subr.mxu0 0.0
    %771 = vmatpush2.msra.mxu0 0.0
    %772 = vmatprep.subr.mxu0 0.0
    %773 = vmatpush2.msra.mxu0 0.0
    %774 = vmatprep.subr.mxu0 0.0
    %775 = vmatpush2.msra.mxu0 0.0
    %776 = vmatprep.subr.mxu0 0.0
    %777 = vmatpush2.msra.mxu0 0.0
    %778 = vmatprep.subr.mxu0 0.0
    %779 = vmatpush2.msra.mxu0 0.0
    %780 = vmatprep.subr.mxu0 0.0
    %781 = vmatpush2.msra.mxu0 0.0
    %782 = vmatprep.mubr.f32.mxu0 0.0
    %v783 = vand.u32 %v527, 4294901760
    %v784 = vsub.f32 %v527, %v783
    %785 = vmatmul.mubr.f32.gmra.mxu0 %v784
    %v786 = vpop.f32.mrf.mxu0
    %v787 = vadd.f32 %v703, %v786
    %v788 = vpop.f32.mrf.mxu0
    %789 = vmatprep.mubr.f32.mxu0 0.0
    %v790 = vand.u32 %v530, 4294901760
    %v791 = vsub.f32 %v530, %v790
    %792 = vmatmul.mubr.f32.gmra.mxu0 %v791
    %v793 = vpop.f32.mrf.mxu0
    %v794 = vadd.f32 %v709, %v793
    %v795 = vpop.f32.mrf.mxu0
    %796 = vdwg.mxu0
    %797 = vmatprep.subr.mxu0 0.0
    %798 = vmatpush1.msra.mxu0 0.0
    %799 = vmatprep.subr.mxu0 0.0
    %800 = vmatpush1.msra.mxu0 0.0
    %801 = vmatprep.subr.mxu0 0.0
    %802 = vmatpush1.msra.mxu0 0.0
    %803 = vmatprep.subr.mxu0 0.0
    %804 = vmatpush1.msra.mxu0 0.0
    %805 = vmatprep.subr.mxu0 0.0
    %806 = vmatpush1.msra.mxu0 0.0
    %807 = vmatprep.subr.mxu0 0.0
    %808 = vmatpush1.msra.mxu0 0.0
    %809 = vmatprep.subr.mxu0 0.0
    %810 = vmatpush1.msra.mxu0 0.0
    %811 = vmatprep.subr.mxu0 0.0
    %812 = vmatpush1.msra.mxu0 0.0
    %813 = vmatprep.subr.mxu0 0.0
    %814 = vmatpush1.msra.mxu0 0.0
    %815 = vmatprep.subr.mxu0 0.0
    %816 = vmatpush1.msra.mxu0 0.0
    %817 = vmatprep.subr.mxu0 0.0
    %818 = vmatpush1.msra.mxu0 0.0
    %819 = vmatprep.subr.mxu0 0.0
    %820 = vmatpush1.msra.mxu0 0.0
    %821 = vmatprep.subr.mxu0 0.0
    %822 = vmatpush1.msra.mxu0 0.0
    %823 = vmatprep.subr.mxu0 0.0
    %v824 = vand.u32 %v25, 4294901760
    %825 = vmatpush1.msra.mxu0 %v824
    %826 = vmatprep.subr.mxu0 0.0
    %v827 = vand.u32 %v24, 4294901760
    %828 = vmatpush1.msra.mxu0 %v827
    %829 = vmatprep.subr.mxu0 0.0
    %v830 = vand.u32 %v23, 4294901760
    %831 = vmatpush1.msra.mxu0 %v830
    %832 = vmatprep.subr.mxu0 0.0
    %833 = vmatpush2.msra.mxu0 0.0
    %834 = vmatprep.subr.mxu0 0.0
    %835 = vmatpush2.msra.mxu0 0.0
    %836 = vmatprep.subr.mxu0 0.0
    %837 = vmatpush2.msra.mxu0 0.0
    %838 = vmatprep.subr.mxu0 0.0
    %839 = vmatpush2.msra.mxu0 0.0
    %840 = vmatprep.subr.mxu0 0.0
    %841 = vmatpush2.msra.mxu0 0.0
    %842 = vmatprep.subr.mxu0 0.0
    %843 = vmatpush2.msra.mxu0 0.0
    %844 = vmatprep.subr.mxu0 0.0
    %845 = vmatpush2.msra.mxu0 0.0
    %846 = vmatprep.subr.mxu0 0.0
    %847 = vmatpush2.msra.mxu0 0.0
    %848 = vmatprep.subr.mxu0 0.0
    %849 = vmatpush2.msra.mxu0 0.0
    %850 = vmatprep.subr.mxu0 0.0
    %851 = vmatpush2.msra.mxu0 0.0
    %852 = vmatprep.subr.mxu0 0.0
    %853 = vmatpush2.msra.mxu0 0.0
    %854 = vmatprep.subr.mxu0 0.0
    %855 = vmatpush2.msra.mxu0 0.0
    %856 = vmatprep.subr.mxu0 0.0
    %857 = vmatpush2.msra.mxu0 0.0
    %858 = vmatprep.subr.mxu0 0.0
    %859 = vmatpush2.msra.mxu0 0.0
    %860 = vmatprep.subr.mxu0 0.0
    %861 = vmatpush2.msra.mxu0 0.0
    %862 = vmatprep.subr.mxu0 0.0
    %863 = vmatpush2.msra.mxu0 0.0
    %864 = vmatprep.mubr.f32.mxu0 0.0
    %v865 = vand.u32 %v527, 4294901760
    %v866 = vsub.f32 %v527, %v865
    %v867 = vand.u32 %v866, 4294901760
    %868 = vmatmul.mubr.f32.gmra.mxu0 %v867
    %v869 = vpop.f32.mrf.mxu0
    %v870 = vadd.f32 %v787, %v869
    %v871 = vpop.f32.mrf.mxu0
    %872 = vmatprep.mubr.f32.mxu0 0.0
    %v873 = vand.u32 %v530, 4294901760
    %v874 = vsub.f32 %v530, %v873
    %v875 = vand.u32 %v874, 4294901760
    %876 = vmatmul.mubr.f32.gmra.mxu0 %v875
    %v877 = vpop.f32.mrf.mxu0
    %v878 = vadd.f32 %v794, %v877
    %v879 = vpop.f32.mrf.mxu0
    %880 = vdwg.mxu0
    %881 = vmatprep.subr.mxu0 0.0
    %882 = vmatpush1.msra.mxu0 0.0
    %883 = vmatprep.subr.mxu0 0.0
    %884 = vmatpush1.msra.mxu0 0.0
    %885 = vmatprep.subr.mxu0 0.0
    %886 = vmatpush1.msra.mxu0 0.0
    %887 = vmatprep.subr.mxu0 0.0
    %888 = vmatpush1.msra.mxu0 0.0
    %889 = vmatprep.subr.mxu0 0.0
    %890 = vmatpush1.msra.mxu0 0.0
    %891 = vmatprep.subr.mxu0 0.0
    %892 = vmatpush1.msra.mxu0 0.0
    %893 = vmatprep.subr.mxu0 0.0
    %894 = vmatpush1.msra.mxu0 0.0
    %895 = vmatprep.subr.mxu0 0.0
    %896 = vmatpush1.msra.mxu0 0.0
    %897 = vmatprep.subr.mxu0 0.0
    %898 = vmatpush1.msra.mxu0 0.0
    %899 = vmatprep.subr.mxu0 0.0
    %900 = vmatpush1.msra.mxu0 0.0
    %901 = vmatprep.subr.mxu0 0.0
    %902 = vmatpush1.msra.mxu0 0.0
    %903 = vmatprep.subr.mxu0 0.0
    %904 = vmatpush1.msra.mxu0 0.0
    %905 = vmatprep.subr.mxu0 0.0
    %906 = vmatpush1.msra.mxu0 0.0
    %907 = vmatprep.subr.mxu0 0.0
    %v908 = vand.u32 %v25, 4294901760
    %v909 = vsub.f32 %v25, %v908
    %v910 = vand.u32 %v909, 4294901760
    %911 = vmatpush1.msra.mxu0 %v910
    %912 = vmatprep.subr.mxu0 0.0
    %v913 = vand.u32 %v24, 4294901760
    %v914 = vsub.f32 %v24, %v913
    %v915 = vand.u32 %v914, 4294901760
    %916 = vmatpush1.msra.mxu0 %v915
    %917 = vmatprep.subr.mxu0 0.0
    %v918 = vand.u32 %v23, 4294901760
    %v919 = vsub.f32 %v23, %v918
    %v920 = vand.u32 %v919, 4294901760
    %921 = vmatpush1.msra.mxu0 %v920
    %922 = vmatprep.subr.mxu0 0.0
    %923 = vmatpush2.msra.mxu0 0.0
    %924 = vmatprep.subr.mxu0 0.0
    %925 = vmatpush2.msra.mxu0 0.0
    %926 = vmatprep.subr.mxu0 0.0
    %927 = vmatpush2.msra.mxu0 0.0
    %928 = vmatprep.subr.mxu0 0.0
    %929 = vmatpush2.msra.mxu0 0.0
    %930 = vmatprep.subr.mxu0 0.0
    %931 = vmatpush2.msra.mxu0 0.0
    %932 = vmatprep.subr.mxu0 0.0
    %933 = vmatpush2.msra.mxu0 0.0
    %934 = vmatprep.subr.mxu0 0.0
    %935 = vmatpush2.msra.mxu0 0.0
    %936 = vmatprep.subr.mxu0 0.0
    %937 = vmatpush2.msra.mxu0 0.0
    %938 = vmatprep.subr.mxu0 0.0
    %939 = vmatpush2.msra.mxu0 0.0
    %940 = vmatprep.subr.mxu0 0.0
    %941 = vmatpush2.msra.mxu0 0.0
    %942 = vmatprep.subr.mxu0 0.0
    %943 = vmatpush2.msra.mxu0 0.0
    %944 = vmatprep.subr.mxu0 0.0
    %945 = vmatpush2.msra.mxu0 0.0
    %946 = vmatprep.subr.mxu0 0.0
    %947 = vmatpush2.msra.mxu0 0.0
    %948 = vmatprep.subr.mxu0 0.0
    %949 = vmatpush2.msra.mxu0 0.0
    %950 = vmatprep.subr.mxu0 0.0
    %951 = vmatpush2.msra.mxu0 0.0
    %952 = vmatprep.subr.mxu0 0.0
    %953 = vmatpush2.msra.mxu0 0.0
    %954 = vmatprep.mubr.f32.mxu0 0.0
    %v955 = vand.u32 %v527, 4294901760
    %956 = vmatmul.mubr.f32.gmra.mxu0 %v955
    %v957 = vpop.f32.mrf.mxu0
    %v958 = vadd.f32 %v870, %v957
    %v959 = vpop.f32.mrf.mxu0
    %960 = vmatprep.mubr.f32.mxu0 0.0
    %v961 = vand.u32 %v530, 4294901760
    %962 = vmatmul.mubr.f32.gmra.mxu0 %v961
    %v963 = vpop.f32.mrf.mxu0
    %v964 = vadd.f32 %v878, %v963
    %v965 = vpop.f32.mrf.mxu0
    %966 = vdwg.mxu0
    %967 = vmatprep.subr.mxu0 0.0
    %968 = vmatpush1.msra.mxu0 0.0
    %969 = vmatprep.subr.mxu0 0.0
    %970 = vmatpush1.msra.mxu0 0.0
    %971 = vmatprep.subr.mxu0 0.0
    %972 = vmatpush1.msra.mxu0 0.0
    %973 = vmatprep.subr.mxu0 0.0
    %974 = vmatpush1.msra.mxu0 0.0
    %975 = vmatprep.subr.mxu0 0.0
    %976 = vmatpush1.msra.mxu0 0.0
    %977 = vmatprep.subr.mxu0 0.0
    %978 = vmatpush1.msra.mxu0 0.0
    %979 = vmatprep.subr.mxu0 0.0
    %980 = vmatpush1.msra.mxu0 0.0
    %981 = vmatprep.subr.mxu0 0.0
    %982 = vmatpush1.msra.mxu0 0.0
    %983 = vmatprep.subr.mxu0 0.0
    %984 = vmatpush1.msra.mxu0 0.0
    %985 = vmatprep.subr.mxu0 0.0
    %986 = vmatpush1.msra.mxu0 0.0
    %987 = vmatprep.subr.mxu0 0.0
    %988 = vmatpush1.msra.mxu0 0.0
    %989 = vmatprep.subr.mxu0 0.0
    %990 = vmatpush1.msra.mxu0 0.0
    %991 = vmatprep.subr.mxu0 0.0
    %992 = vmatpush1.msra.mxu0 0.0
    %993 = vmatprep.subr.mxu0 0.0
    %v994 = vand.u32 %v25, 4294901760
    %995 = vmatpush1.msra.mxu0 %v994
    %996 = vmatprep.subr.mxu0 0.0
    %v997 = vand.u32 %v24, 4294901760
    %998 = vmatpush1.msra.mxu0 %v997
    %999 = vmatprep.subr.mxu0 0.0
    %v1000 = vand.u32 %v23, 4294901760
    %1001 = vmatpush1.msra.mxu0 %v1000
    %1002 = vmatprep.subr.mxu0 0.0
    %1003 = vmatpush2.msra.mxu0 0.0
    %1004 = vmatprep.subr.mxu0 0.0
    %1005 = vmatpush2.msra.mxu0 0.0
    %1006 = vmatprep.subr.mxu0 0.0
    %1007 = vmatpush2.msra.mxu0 0.0
    %1008 = vmatprep.subr.mxu0 0.0
    %1009 = vmatpush2.msra.mxu0 0.0
    %1010 = vmatprep.subr.mxu0 0.0
    %1011 = vmatpush2.msra.mxu0 0.0
    %1012 = vmatprep.subr.mxu0 0.0
    %1013 = vmatpush2.msra.mxu0 0.0
    %1014 = vmatprep.subr.mxu0 0.0
    %1015 = vmatpush2.msra.mxu0 0.0
    %1016 = vmatprep.subr.mxu0 0.0
    %1017 = vmatpush2.msra.mxu0 0.0
    %1018 = vmatprep.subr.mxu0 0.0
    %1019 = vmatpush2.msra.mxu0 0.0
    %1020 = vmatprep.subr.mxu0 0.0
    %1021 = vmatpush2.msra.mxu0 0.0
    %1022 = vmatprep.subr.mxu0 0.0
    %1023 = vmatpush2.msra.mxu0 0.0
    %1024 = vmatprep.subr.mxu0 0.0
    %1025 = vmatpush2.msra.mxu0 0.0
    %1026 = vmatprep.subr.mxu0 0.0
    %1027 = vmatpush2.msra.mxu0 0.0
    %1028 = vmatprep.subr.mxu0 0.0
    %1029 = vmatpush2.msra.mxu0 0.0
    %1030 = vmatprep.subr.mxu0 0.0
    %1031 = vmatpush2.msra.mxu0 0.0
    %1032 = vmatprep.subr.mxu0 0.0
    %1033 = vmatpush2.msra.mxu0 0.0
    %1034 = vmatprep.mubr.f32.mxu0 0.0
    %v1035 = vand.u32 %v527, 4294901760
    %1036 = vmatmul.mubr.f32.gmra.mxu0 %v1035
    %v1037 = vpop.f32.mrf.mxu0
    %v1038 = vadd.f32 %v958, %v1037
    %v1039 = vpop.f32.mrf.mxu0
    %1040 = vmatprep.mubr.f32.mxu0 0.0
    %v1041 = vand.u32 %v530, 4294901760
    %1042 = vmatmul.mubr.f32.gmra.mxu0 %v1041
    %v1043 = vpop.f32.mrf.mxu0
    %v1044 = vadd.f32 %v964, %v1043
    %v1045 = vpop.f32.mrf.mxu0
    %1046 = vdwg.mxu0
    %v1047 = vld [vmem:[%s4] sm:$0x1]
    %v1049 = vlaneseq
    %v1050 = vshrl.u32 %v1049, 7
    %v1051 = vsub.s32 0, %v1050
    %v1052 = vrot.slane %v1047, %v1051
    %v1054 = vadd.f32 %v1038, %v1052
    %v1055 = vadd.f32 %v1044, %v1052
    %1056 = vst.msk [vmem:[#allocation2] sm:$0xff] %vm525, %v1054
    %1057 = vst.msk [vmem:[#allocation2 + $0x8] sm:$0xff] %vm525, %v1055
    // Predicated region
    $region22: #{concat_norm1d.3} parent=1 // pred_check
      _
    $region23: #{concat_norm1d.3} parent=1 // pred_check_branch
      %1059 = sbr.rel (0) target = $region25
    $region24: #{concat_norm1d.3} parent=1 // pred_region
      %s1061 = ssub.s32 256, 256
      %1062 = vsyncadd [#allocation3], %s1061
      %s1063 = sshll.u32 [#allocation2], 4
      %s1064 = int_to_ptr.vmem [resolvable:$true] %s1063
      %1069 = dma.vmem_to_hbm [thread:$0]  %s1064, 256, %s5, [#allocation3], 128, 128, 8
    $region25: #{concat_norm1d.3} parent=1 // pred_fallthru
      _
    // Predicated region
    $region26: #{concat_norm1d.3} parent=1 // pred_check
      _
    $region27: #{concat_norm1d.3} parent=1 // pred_check_branch
      %1071 = sbr.rel (0) target = $region29
    $region28: #{concat_norm1d.3} parent=1 // pred_region
      %1072 = dma.done [#allocation3], 256
    $region29: #{concat_norm1d.3} parent=1 // pred_fallthru
      _
    %1073 = vsyncpa [#allocation3], 1

</llo_original>
